<compile_context>
chip_gen: v7x
topology: tpu7x:2x2x1
jax: 0.10.0
libtpu: 0.0.40
codegen_flags: <defaults>
</compile_context>

<pallas_src>
import functools

import jax
import jax.numpy as jnp
from jax import lax
from jax.experimental import pallas as pl
from jax.experimental.pallas import tpu as pltpu


def _tap_masks(pix, col, *, d, H, W):
    """Per-tap validity masks for a 3x3 conv with dilation=d on the flattened
    (1, HW_pad) pixel axis.  A tap is valid iff its source pixel lies inside the
    image; invalid taps contribute zero (== the conv's zero padding)."""
    m_top = pix >= d * W            # row >= d   (tap row offset -d in-image)
    m_bot = pix < (H - d) * W       # row < H-d  (tap row offset +d in-image)
    m_left = col >= d               # col >= d   (tap col offset -d in-image)
    m_right = col < W - d           # col < W-d  (tap col offset +d in-image)
    masks = []
    for kh in range(3):
        dh = (kh - 1) * d
        for kw in range(3):
            dw = (kw - 1) * d
            valid = None
            if dh < 0:
                valid = m_top
            elif dh > 0:
                valid = m_bot
            if dw < 0:
                valid = m_left if valid is None else valid & m_left
            elif dw > 0:
                valid = m_right if valid is None else valid & m_right
            masks.append(valid)      # None == center-ish tap, always valid
    return masks


def _conv_branch(ch_max, ch_mean, tap_masks, w_ref, b_ref, *, d, W, HW_pad):
    """3x3 conv (dilation=d, zero padding=d) over the 2-channel pooled pair,
    on lane-dense (1, HW_pad) views.  Tap shifts are static XLU lane rotations
    (pltpu.roll); wraps only reach positions zeroed by the edge masks."""
    acc = jnp.full(ch_max.shape, b_ref[0], dtype=jnp.float32)
    for kh in range(3):
        dh = (kh - 1) * d
        for kw in range(3):
            dw = (kw - 1) * d
            off = dh * W + dw
            shift = (-off) % HW_pad          # tap[p] == pooled[p + off]
            if shift == 0:
                t_max, t_mean = ch_max, ch_mean
            else:
                t_max = pltpu.roll(ch_max, shift=shift, axis=1)
                t_mean = pltpu.roll(ch_mean, shift=shift, axis=1)
            contrib = (w_ref[kh * 3 + kw] * t_max
                       + w_ref[9 + kh * 3 + kw] * t_mean)
            valid = tap_masks[kh * 3 + kw]
            if valid is not None:
                contrib = jnp.where(valid, contrib, 0.0)
            acc = acc + contrib
    return acc


def _att_block_kernel(x_ref, col_ref, w1_ref, b1_ref, w2_ref, b2_ref, out_ref,
                      *, H, W, HW_pad):
    Bt = x_ref.shape[0]
    col = col_ref[...]                                        # (1, HW_pad) int32
    pix = lax.broadcasted_iota(jnp.int32, (1, HW_pad), 1)     # flat pixel index

    # Hoisted per-tap edge masks (shared by every image in this step).
    masks1 = _tap_masks(pix, col, d=1, H=H, W=W)
    masks2 = _tap_masks(pix, col, d=2, H=H, W=W)

    for i in range(Bt):   # static unroll over the images folded into this step
        xi = x_ref[i]                                             # (C, HW_pad)

        # Shared channel pooling for both branches (f32 accumulation).
        ch_max = jnp.max(xi, axis=0, keepdims=True).astype(jnp.float32)
        ch_mean = jnp.mean(xi, axis=0, keepdims=True, dtype=jnp.float32)

        # Branch 1 (dilation=1): compute and store immediately (small live set).
        a1 = _conv_branch(ch_max, ch_mean, masks1, w1_ref, b1_ref,
                          d=1, W=W, HW_pad=HW_pad)
        out_ref[i, :, 0:HW_pad] = (a1.astype(xi.dtype) * xi).astype(out_ref.dtype)

        # Branch 2 (dilation=2).
        a2 = _conv_branch(ch_max, ch_mean, masks2, w2_ref, b2_ref,
                          d=2, W=W, HW_pad=HW_pad)
        out_ref[i, :, HW_pad:2 * HW_pad] = (
            a2.astype(xi.dtype) * xi).astype(out_ref.dtype)


def _choose_bt(B, per_image_bytes, *, vmem_target_bytes=6 << 20, max_bt=8):
    """How many batch images to fold into one grid step."""
    bt = max(1, min(B, max_bt, vmem_target_bytes // max(per_image_bytes, 1)))
    # Keep >= 2 grid steps (v7x megacore) when the per-image work is sizeable.
    if bt >= B and B >= 2 and B * per_image_bytes >= (4 << 20):
        bt = (B + 1) // 2
    while B % bt:            # full blocks only (no masked edge blocks)
        bt -= 1
    return max(int(bt), 1)


def att_block(x, w1, b1, w2, b2):
    B, C, H, W = x.shape
    HW = H * W
    HW_pad = ((HW + 127) // 128) * 128       # lane-aligned flat pixel axis
    dsize = x.dtype.itemsize

    x_flat = x.reshape(B, C, HW)             # contiguous -> free reshape
    if HW_pad != HW:
        x_flat = jnp.pad(x_flat, ((0, 0), (0, 0), (0, HW_pad - HW)))

    col_idx = (jnp.arange(HW_pad, dtype=jnp.int32) % W).reshape(1, HW_pad)

    per_image_bytes = 3 * C * HW_pad * dsize  # input tile + two output halves
    bt = _choose_bt(B, per_image_bytes)
    grid = (B // bt,)

    # Raise scoped VMEM only when the double-buffered blocks actually need it
    # (v5e default is 16 MiB; v6e/v7x 32 MiB).
    needed = 2 * bt * per_image_bytes + (2 << 20)
    vmem_limit = None if needed <= (16 << 20) else min(needed, 64 << 20)

    smem = pl.BlockSpec(memory_space=pltpu.MemorySpace.SMEM)
    kernel = functools.partial(_att_block_kernel, H=H, W=W, HW_pad=HW_pad)

    cost = pl.CostEstimate(
        flops=int(4 * B * C * HW + 72 * B * HW),
        transcendentals=0,
        bytes_accessed=int(3 * B * C * HW * dsize))

    out_flat = pl.pallas_call(
        kernel,
        out_shape=jax.ShapeDtypeStruct((B, C, 2 * HW_pad), x.dtype),
        grid=grid,
        in_specs=[
            pl.BlockSpec((bt, C, HW_pad), lambda g: (g, 0, 0)),
            pl.BlockSpec((1, HW_pad), lambda g: (0, 0)),
            smem, smem, smem, smem,
        ],
        out_specs=pl.BlockSpec((bt, C, 2 * HW_pad), lambda g: (g, 0, 0)),
        compiler_params=pltpu.CompilerParams(
            dimension_semantics=("parallel",),
            vmem_limit_bytes=vmem_limit),
        cost_estimate=cost,
    )(x_flat, col_idx, w1.reshape(-1), b1, w2.reshape(-1), b2)

    # (B, C, 2, HW_pad) -> strip lane padding -> (B, 2*C, H, W).
    # Output channel j = 2*c + branch, i.e. exactly concat([x1, x2], dim=1)
    # followed by channel_shuffle(groups=2).
    return out_flat.reshape(B, C, 2, HW_pad)[..., :HW].reshape(B, 2 * C, H, W)


# ---------------- pure-JAX reference (for correctness check) ----------------
def _ref_spatial_attention(x, w, b, d):
    ch_max = jnp.max(x, axis=1, keepdims=True)
    ch_mean = jnp.mean(x, axis=1, keepdims=True)
    a = jnp.concatenate([ch_max, ch_mean], axis=1)        # (B, 2, H, W)
    attn = lax.conv_general_dilated(
        a, w, window_strides=(1, 1), padding=((d, d), (d, d)),
        rhs_dilation=(d, d), dimension_numbers=("NCHW", "OIHW", "NCHW"),
        precision=lax.Precision.HIGHEST)
    attn = attn + b.reshape(1, -1, 1, 1)
    return attn * x


def _ref_att_block(x, w1, b1, w2, b2):
    x1 = _ref_spatial_attention(x, w1, b1, 1)
    x2 = _ref_spatial_attention(x, w2, b2, 2)
    y = jnp.concatenate([x1, x2], axis=1)
    B, C2, H, W = y.shape
    y = y.reshape(B, 2, C2 // 2, H, W).transpose(0, 2, 1, 3, 4).reshape(B, C2, H, W)
    return y


if __name__ == "__main__":
    key = jax.random.PRNGKey(0)
    kx, kw1, kb1, kw2, kb2, kx2 = jax.random.split(key, 6)

    B, C, H, W = 2, 4, 16, 16
    x = jax.random.normal(kx, (B, C, H, W), dtype=jnp.float32)

    # Conv2d(2, 1, kernel_size=3) parameters, deterministic init.
    w1 = 0.2 * jax.random.normal(kw1, (1, 2, 3, 3), dtype=jnp.float32)
    b1 = 0.1 * jax.random.normal(kb1, (1,), dtype=jnp.float32)
    w2 = 0.2 * jax.random.normal(kw2, (1, 2, 3, 3), dtype=jnp.float32)
    b2 = 0.1 * jax.random.normal(kb2, (1,), dtype=jnp.float32)

    # --- f32, 16x16 (lane-aligned HW) ---
    out = jax.block_until_ready(att_block(x, w1, b1, w2, b2))
    ref = _ref_att_block(x, w1, b1, w2, b2)
    assert out.shape == (B, 2 * C, H, W)
    assert jnp.allclose(out, ref, atol=1e-4, rtol=1e-4), (
        f"f32 max abs err = {jnp.max(jnp.abs(out - ref))}")

    # --- f32, 14x14 (HW=196 -> padded to 256; exercises lane-padding path) ---
    x14 = jax.random.normal(kx2, (B, C, 14, 14), dtype=jnp.float32)
    out14 = jax.block_until_ready(att_block(x14, w1, b1, w2, b2))
    ref14 = _ref_att_block(x14, w1, b1, w2, b2)
    assert out14.shape == (B, 2 * C, 14, 14)
    assert jnp.allclose(out14, ref14, atol=1e-4, rtol=1e-4), (
        f"14x14 max abs err = {jnp.max(jnp.abs(out14 - ref14))}")

    # --- bf16, 16x16 (low-precision path; compare vs f32 reference) ---
    xb = x.astype(jnp.bfloat16)
    outb = jax.block_until_ready(att_block(xb, w1, b1, w2, b2))
    refb = _ref_att_block(xb.astype(jnp.float32), w1, b1, w2, b2)
    assert outb.dtype == jnp.bfloat16
    err_b = jnp.max(jnp.abs(outb.astype(jnp.float32) - refb))
    assert err_b < 0.15, f"bf16 max abs err = {err_b}"

    print("KERNEL_OK")
</pallas_src>

<mosaic_0001>
module attributes {stable_mosaic.version = 11 : i64} {
  func.func @_att_block_kernel(%arg0: i32, %arg1: memref<2x4x256xf32, #tpu.memory_space<vmem>>, %arg2: memref<1x256xi32, #tpu.memory_space<vmem>>, %arg3: memref<18xf32, #tpu.memory_space<smem>>, %arg4: memref<1xf32, #tpu.memory_space<smem>>, %arg5: memref<18xf32, #tpu.memory_space<smem>>, %arg6: memref<1xf32, #tpu.memory_space<smem>>, %arg7: memref<2x4x512xf32, #tpu.memory_space<vmem>>) attributes {dimension_semantics = [#tpu.dimension_semantics<parallel>], iteration_bounds = array<i64: 1>, scalar_prefetch = 0 : i64, scratch_operands = 0 : i64, tpu.core_type = #tpu.core_type<tc>, window_params = [{transform_indices = @transform_0, window_bounds = array<i64: 2, 4, 256>}, {pipeline_mode = #tpu.pipeline_mode<synchronous>, transform_indices = @transform_1, window_bounds = array<i64: 1, 256>}, {transform_indices = @transform_2, window_bounds = array<i64: 18>}, {transform_indices = @transform_3, window_bounds = array<i64: 1>}, {transform_indices = @transform_4, window_bounds = array<i64: 18>}, {transform_indices = @transform_5, window_bounds = array<i64: 1>}, {transform_indices = @transform_6, window_bounds = array<i64: 2, 4, 512>}]} {
    %c0 = arith.constant 0 : index
    %c0_0 = arith.constant 0 : index
    %0 = vector.load %arg2[%c0, %c0_0] : memref<1x256xi32, #tpu.memory_space<vmem>>, vector<1x256xi32>
    %1 = tpu.iota {dimensions = array<i32: 1>} : vector<1x256xi32>
    %c16_i32 = arith.constant 16 : i32
    %2 = vector.broadcast %c16_i32 : i32 to vector<1x256xi32>
    %3 = arith.cmpi sge, %1, %2 : vector<1x256xi32>
    %c240_i32 = arith.constant 240 : i32
    %4 = vector.broadcast %c240_i32 : i32 to vector<1x256xi32>
    %5 = arith.cmpi slt, %1, %4 : vector<1x256xi32>
    %c1_i32 = arith.constant 1 : i32
    %6 = vector.broadcast %c1_i32 : i32 to vector<1x256xi32>
    %7 = arith.cmpi sge, %0, %6 : vector<1x256xi32>
    %c15_i32 = arith.constant 15 : i32
    %8 = vector.broadcast %c15_i32 : i32 to vector<1x256xi32>
    %9 = arith.cmpi slt, %0, %8 : vector<1x256xi32>
    %10 = arith.andi %3, %7 : vector<1x256xi1>
    %11 = arith.andi %3, %9 : vector<1x256xi1>
    %12 = arith.andi %5, %7 : vector<1x256xi1>
    %13 = arith.andi %5, %9 : vector<1x256xi1>
    %c32_i32 = arith.constant 32 : i32
    %14 = vector.broadcast %c32_i32 : i32 to vector<1x256xi32>
    %15 = arith.cmpi sge, %1, %14 : vector<1x256xi32>
    %c224_i32 = arith.constant 224 : i32
    %16 = vector.broadcast %c224_i32 : i32 to vector<1x256xi32>
    %17 = arith.cmpi slt, %1, %16 : vector<1x256xi32>
    %c2_i32 = arith.constant 2 : i32
    %18 = vector.broadcast %c2_i32 : i32 to vector<1x256xi32>
    %19 = arith.cmpi sge, %0, %18 : vector<1x256xi32>
    %c14_i32 = arith.constant 14 : i32
    %20 = vector.broadcast %c14_i32 : i32 to vector<1x256xi32>
    %21 = arith.cmpi slt, %0, %20 : vector<1x256xi32>
    %22 = arith.andi %15, %19 : vector<1x256xi1>
    %23 = arith.andi %15, %21 : vector<1x256xi1>
    %24 = arith.andi %17, %19 : vector<1x256xi1>
    %25 = arith.andi %17, %21 : vector<1x256xi1>
    %c0_1 = arith.constant 0 : index
    %c0_2 = arith.constant 0 : index
    %c0_3 = arith.constant 0 : index
    %26 = vector.load %arg1[%c0_1, %c0_2, %c0_3] : memref<2x4x256xf32, #tpu.memory_space<vmem>>, vector<1x4x256xf32>
    %27 = vector.shape_cast %26 : vector<1x4x256xf32> to vector<4x256xf32>
    %cst = arith.constant dense<0xFF800000> : vector<256xf32>
    %28 = vector.multi_reduction <maximumf>, %27, %cst [0] : vector<4x256xf32> to vector<256xf32>
    %29 = vector.shape_cast %28 : vector<256xf32> to vector<1x256xf32>
    %cst_4 = arith.constant dense<0.000000e+00> : vector<256xf32>
    %30 = vector.multi_reduction <add>, %27, %cst_4 [0] : vector<4x256xf32> to vector<256xf32>
    %31 = vector.shape_cast %30 : vector<256xf32> to vector<1x256xf32>
    %cst_5 = arith.constant 4.000000e+00 : f32
    %32 = vector.broadcast %cst_5 : f32 to vector<1x256xf32>
    %33 = arith.divf %31, %32 : vector<1x256xf32>
    %c0_6 = arith.constant 0 : index
    %34 = memref.load %arg4[%c0_6] : memref<1xf32, #tpu.memory_space<smem>>
    %35 = vector.broadcast %34 : f32 to vector<1x256xf32>
    %c17_i32 = arith.constant 17 : i32
    %36 = tpu.dynamic_rotate %29 by %c17_i32 dim 1 : vector<1x256xf32>, i32 -> vector<1x256xf32>
    %c17_i32_7 = arith.constant 17 : i32
    %37 = tpu.dynamic_rotate %33 by %c17_i32_7 dim 1 : vector<1x256xf32>, i32 -> vector<1x256xf32>
    %c0_8 = arith.constant 0 : index
    %38 = memref.load %arg3[%c0_8] : memref<18xf32, #tpu.memory_space<smem>>
    %39 = vector.broadcast %38 : f32 to vector<1x256xf32>
    %40 = arith.mulf %39, %36 : vector<1x256xf32>
    %c9 = arith.constant 9 : index
    %41 = memref.load %arg3[%c9] : memref<18xf32, #tpu.memory_space<smem>>
    %42 = vector.broadcast %41 : f32 to vector<1x256xf32>
    %43 = arith.mulf %42, %37 : vector<1x256xf32>
    %44 = arith.addf %40, %43 : vector<1x256xf32>
    %cst_9 = arith.constant 0.000000e+00 : f32
    %45 = vector.broadcast %cst_9 : f32 to vector<1x256xf32>
    %46 = arith.select %10, %44, %45 : vector<1x256xi1>, vector<1x256xf32>
    %47 = arith.addf %35, %46 : vector<1x256xf32>
    %c16_i32_10 = arith.constant 16 : i32
    %48 = tpu.dynamic_rotate %29 by %c16_i32_10 dim 1 : vector<1x256xf32>, i32 -> vector<1x256xf32>
    %c16_i32_11 = arith.constant 16 : i32
    %49 = tpu.dynamic_rotate %33 by %c16_i32_11 dim 1 : vector<1x256xf32>, i32 -> vector<1x256xf32>
    %c1 = arith.constant 1 : index
    %50 = memref.load %arg3[%c1] : memref<18xf32, #tpu.memory_space<smem>>
    %51 = vector.broadcast %50 : f32 to vector<1x256xf32>
    %52 = arith.mulf %51, %48 : vector<1x256xf32>
    %c10 = arith.constant 10 : index
    %53 = memref.load %arg3[%c10] : memref<18xf32, #tpu.memory_space<smem>>
    %54 = vector.broadcast %53 : f32 to vector<1x256xf32>
    %55 = arith.mulf %54, %49 : vector<1x256xf32>
    %56 = arith.addf %52, %55 : vector<1x256xf32>
    %cst_12 = arith.constant 0.000000e+00 : f32
    %57 = vector.broadcast %cst_12 : f32 to vector<1x256xf32>
    %58 = arith.select %3, %56, %57 : vector<1x256xi1>, vector<1x256xf32>
    %59 = arith.addf %47, %58 : vector<1x256xf32>
    %c15_i32_13 = arith.constant 15 : i32
    %60 = tpu.dynamic_rotate %29 by %c15_i32_13 dim 1 : vector<1x256xf32>, i32 -> vector<1x256xf32>
    %c15_i32_14 = arith.constant 15 : i32
    %61 = tpu.dynamic_rotate %33 by %c15_i32_14 dim 1 : vector<1x256xf32>, i32 -> vector<1x256xf32>
    %c2 = arith.constant 2 : index
    %62 = memref.load %arg3[%c2] : memref<18xf32, #tpu.memory_space<smem>>
    %63 = vector.broadcast %62 : f32 to vector<1x256xf32>
    %64 = arith.mulf %63, %60 : vector<1x256xf32>
    %c11 = arith.constant 11 : index
    %65 = memref.load %arg3[%c11] : memref<18xf32, #tpu.memory_space<smem>>
    %66 = vector.broadcast %65 : f32 to vector<1x256xf32>
    %67 = arith.mulf %66, %61 : vector<1x256xf32>
    %68 = arith.addf %64, %67 : vector<1x256xf32>
    %cst_15 = arith.constant 0.000000e+00 : f32
    %69 = vector.broadcast %cst_15 : f32 to vector<1x256xf32>
    %70 = arith.select %11, %68, %69 : vector<1x256xi1>, vector<1x256xf32>
    %71 = arith.addf %59, %70 : vector<1x256xf32>
    %c1_i32_16 = arith.constant 1 : i32
    %72 = tpu.dynamic_rotate %29 by %c1_i32_16 dim 1 : vector<1x256xf32>, i32 -> vector<1x256xf32>
    %c1_i32_17 = arith.constant 1 : i32
    %73 = tpu.dynamic_rotate %33 by %c1_i32_17 dim 1 : vector<1x256xf32>, i32 -> vector<1x256xf32>
    %c3 = arith.constant 3 : index
    %74 = memref.load %arg3[%c3] : memref<18xf32, #tpu.memory_space<smem>>
    %75 = vector.broadcast %74 : f32 to vector<1x256xf32>
    %76 = arith.mulf %75, %72 : vector<1x256xf32>
    %c12 = arith.constant 12 : index
    %77 = memref.load %arg3[%c12] : memref<18xf32, #tpu.memory_space<smem>>
    %78 = vector.broadcast %77 : f32 to vector<1x256xf32>
    %79 = arith.mulf %78, %73 : vector<1x256xf32>
    %80 = arith.addf %76, %79 : vector<1x256xf32>
    %cst_18 = arith.constant 0.000000e+00 : f32
    %81 = vector.broadcast %cst_18 : f32 to vector<1x256xf32>
    %82 = arith.select %7, %80, %81 : vector<1x256xi1>, vector<1x256xf32>
    %83 = arith.addf %71, %82 : vector<1x256xf32>
    %c4 = arith.constant 4 : index
    %84 = memref.load %arg3[%c4] : memref<18xf32, #tpu.memory_space<smem>>
    %85 = vector.broadcast %84 : f32 to vector<1x256xf32>
    %86 = arith.mulf %85, %29 : vector<1x256xf32>
    %c13 = arith.constant 13 : index
    %87 = memref.load %arg3[%c13] : memref<18xf32, #tpu.memory_space<smem>>
    %88 = vector.broadcast %87 : f32 to vector<1x256xf32>
    %89 = arith.mulf %88, %33 : vector<1x256xf32>
    %90 = arith.addf %86, %89 : vector<1x256xf32>
    %91 = arith.addf %83, %90 : vector<1x256xf32>
    %c255_i32 = arith.constant 255 : i32
    %92 = tpu.dynamic_rotate %29 by %c255_i32 dim 1 : vector<1x256xf32>, i32 -> vector<1x256xf32>
    %c255_i32_19 = arith.constant 255 : i32
    %93 = tpu.dynamic_rotate %33 by %c255_i32_19 dim 1 : vector<1x256xf32>, i32 -> vector<1x256xf32>
    %c5 = arith.constant 5 : index
    %94 = memref.load %arg3[%c5] : memref<18xf32, #tpu.memory_space<smem>>
    %95 = vector.broadcast %94 : f32 to vector<1x256xf32>
    %96 = arith.mulf %95, %92 : vector<1x256xf32>
    %c14 = arith.constant 14 : index
    %97 = memref.load %arg3[%c14] : memref<18xf32, #tpu.memory_space<smem>>
    %98 = vector.broadcast %97 : f32 to vector<1x256xf32>
    %99 = arith.mulf %98, %93 : vector<1x256xf32>
    %100 = arith.addf %96, %99 : vector<1x256xf32>
    %cst_20 = arith.constant 0.000000e+00 : f32
    %101 = vector.broadcast %cst_20 : f32 to vector<1x256xf32>
    %102 = arith.select %9, %100, %101 : vector<1x256xi1>, vector<1x256xf32>
    %103 = arith.addf %91, %102 : vector<1x256xf32>
    %c241_i32 = arith.constant 241 : i32
    %104 = tpu.dynamic_rotate %29 by %c241_i32 dim 1 : vector<1x256xf32>, i32 -> vector<1x256xf32>
    %c241_i32_21 = arith.constant 241 : i32
    %105 = tpu.dynamic_rotate %33 by %c241_i32_21 dim 1 : vector<1x256xf32>, i32 -> vector<1x256xf32>
    %c6 = arith.constant 6 : index
    %106 = memref.load %arg3[%c6] : memref<18xf32, #tpu.memory_space<smem>>
    %107 = vector.broadcast %106 : f32 to vector<1x256xf32>
    %108 = arith.mulf %107, %104 : vector<1x256xf32>
    %c15 = arith.constant 15 : index
    %109 = memref.load %arg3[%c15] : memref<18xf32, #tpu.memory_space<smem>>
    %110 = vector.broadcast %109 : f32 to vector<1x256xf32>
    %111 = arith.mulf %110, %105 : vector<1x256xf32>
    %112 = arith.addf %108, %111 : vector<1x256xf32>
    %cst_22 = arith.constant 0.000000e+00 : f32
    %113 = vector.broadcast %cst_22 : f32 to vector<1x256xf32>
    %114 = arith.select %12, %112, %113 : vector<1x256xi1>, vector<1x256xf32>
    %115 = arith.addf %103, %114 : vector<1x256xf32>
    %c240_i32_23 = arith.constant 240 : i32
    %116 = tpu.dynamic_rotate %29 by %c240_i32_23 dim 1 : vector<1x256xf32>, i32 -> vector<1x256xf32>
    %c240_i32_24 = arith.constant 240 : i32
    %117 = tpu.dynamic_rotate %33 by %c240_i32_24 dim 1 : vector<1x256xf32>, i32 -> vector<1x256xf32>
    %c7 = arith.constant 7 : index
    %118 = memref.load %arg3[%c7] : memref<18xf32, #tpu.memory_space<smem>>
    %119 = vector.broadcast %118 : f32 to vector<1x256xf32>
    %120 = arith.mulf %119, %116 : vector<1x256xf32>
    %c16 = arith.constant 16 : index
    %121 = memref.load %arg3[%c16] : memref<18xf32, #tpu.memory_space<smem>>
    %122 = vector.broadcast %121 : f32 to vector<1x256xf32>
    %123 = arith.mulf %122, %117 : vector<1x256xf32>
    %124 = arith.addf %120, %123 : vector<1x256xf32>
    %cst_25 = arith.constant 0.000000e+00 : f32
    %125 = vector.broadcast %cst_25 : f32 to vector<1x256xf32>
    %126 = arith.select %5, %124, %125 : vector<1x256xi1>, vector<1x256xf32>
    %127 = arith.addf %115, %126 : vector<1x256xf32>
    %c239_i32 = arith.constant 239 : i32
    %128 = tpu.dynamic_rotate %29 by %c239_i32 dim 1 : vector<1x256xf32>, i32 -> vector<1x256xf32>
    %c239_i32_26 = arith.constant 239 : i32
    %129 = tpu.dynamic_rotate %33 by %c239_i32_26 dim 1 : vector<1x256xf32>, i32 -> vector<1x256xf32>
    %c8 = arith.constant 8 : index
    %130 = memref.load %arg3[%c8] : memref<18xf32, #tpu.memory_space<smem>>
    %131 = vector.broadcast %130 : f32 to vector<1x256xf32>
    %132 = arith.mulf %131, %128 : vector<1x256xf32>
    %c17 = arith.constant 17 : index
    %133 = memref.load %arg3[%c17] : memref<18xf32, #tpu.memory_space<smem>>
    %134 = vector.broadcast %133 : f32 to vector<1x256xf32>
    %135 = arith.mulf %134, %129 : vector<1x256xf32>
    %136 = arith.addf %132, %135 : vector<1x256xf32>
    %cst_27 = arith.constant 0.000000e+00 : f32
    %137 = vector.broadcast %cst_27 : f32 to vector<1x256xf32>
    %138 = arith.select %13, %136, %137 : vector<1x256xi1>, vector<1x256xf32>
    %139 = arith.addf %127, %138 : vector<1x256xf32>
    %140 = vector.broadcast %139 : vector<1x256xf32> to vector<4x256xf32>
    %141 = arith.mulf %140, %27 : vector<4x256xf32>
    %c0_28 = arith.constant 0 : index
    %c0_29 = arith.constant 0 : index
    %c0_30 = arith.constant 0 : index
    %142 = vector.load %arg7[%c0_28, %c0_29, %c0_30] : memref<2x4x512xf32, #tpu.memory_space<vmem>>, vector<1x4x256xf32>
    %143 = vector.shape_cast %142 : vector<1x4x256xf32> to vector<4x256xf32>
    %144 = vector.shape_cast %141 : vector<4x256xf32> to vector<1x4x256xf32>
    tpu.vector_store %arg7[%c0_28, %c0_29, %c0_30], %144 {strides = array<i32>} : memref<2x4x512xf32, #tpu.memory_space<vmem>>, vector<1x4x256xf32>,
    %c0_31 = arith.constant 0 : index
    %145 = memref.load %arg6[%c0_31] : memref<1xf32, #tpu.memory_space<smem>>
    %146 = vector.broadcast %145 : f32 to vector<1x256xf32>
    %c34_i32 = arith.constant 34 : i32
    %147 = tpu.dynamic_rotate %29 by %c34_i32 dim 1 : vector<1x256xf32>, i32 -> vector<1x256xf32>
    %c34_i32_32 = arith.constant 34 : i32
    %148 = tpu.dynamic_rotate %33 by %c34_i32_32 dim 1 : vector<1x256xf32>, i32 -> vector<1x256xf32>
    %c0_33 = arith.constant 0 : index
    %149 = memref.load %arg5[%c0_33] : memref<18xf32, #tpu.memory_space<smem>>
    %150 = vector.broadcast %149 : f32 to vector<1x256xf32>
    %151 = arith.mulf %150, %147 : vector<1x256xf32>
    %c9_34 = arith.constant 9 : index
    %152 = memref.load %arg5[%c9_34] : memref<18xf32, #tpu.memory_space<smem>>
    %153 = vector.broadcast %152 : f32 to vector<1x256xf32>
    %154 = arith.mulf %153, %148 : vector<1x256xf32>
    %155 = arith.addf %151, %154 : vector<1x256xf32>
    %cst_35 = arith.constant 0.000000e+00 : f32
    %156 = vector.broadcast %cst_35 : f32 to vector<1x256xf32>
    %157 = arith.select %22, %155, %156 : vector<1x256xi1>, vector<1x256xf32>
    %158 = arith.addf %146, %157 : vector<1x256xf32>
    %c32_i32_36 = arith.constant 32 : i32
    %159 = tpu.dynamic_rotate %29 by %c32_i32_36 dim 1 : vector<1x256xf32>, i32 -> vector<1x256xf32>
    %c32_i32_37 = arith.constant 32 : i32
    %160 = tpu.dynamic_rotate %33 by %c32_i32_37 dim 1 : vector<1x256xf32>, i32 -> vector<1x256xf32>
    %c1_38 = arith.constant 1 : index
    %161 = memref.load %arg5[%c1_38] : memref<18xf32, #tpu.memory_space<smem>>
    %162 = vector.broadcast %161 : f32 to vector<1x256xf32>
    %163 = arith.mulf %162, %159 : vector<1x256xf32>
    %c10_39 = arith.constant 10 : index
    %164 = memref.load %arg5[%c10_39] : memref<18xf32, #tpu.memory_space<smem>>
    %165 = vector.broadcast %164 : f32 to vector<1x256xf32>
    %166 = arith.mulf %165, %160 : vector<1x256xf32>
    %167 = arith.addf %163, %166 : vector<1x256xf32>
    %cst_40 = arith.constant 0.000000e+00 : f32
    %168 = vector.broadcast %cst_40 : f32 to vector<1x256xf32>
    %169 = arith.select %15, %167, %168 : vector<1x256xi1>, vector<1x256xf32>
    %170 = arith.addf %158, %169 : vector<1x256xf32>
    %c30_i32 = arith.constant 30 : i32
    %171 = tpu.dynamic_rotate %29 by %c30_i32 dim 1 : vector<1x256xf32>, i32 -> vector<1x256xf32>
    %c30_i32_41 = arith.constant 30 : i32
    %172 = tpu.dynamic_rotate %33 by %c30_i32_41 dim 1 : vector<1x256xf32>, i32 -> vector<1x256xf32>
    %c2_42 = arith.constant 2 : index
    %173 = memref.load %arg5[%c2_42] : memref<18xf32, #tpu.memory_space<smem>>
    %174 = vector.broadcast %173 : f32 to vector<1x256xf32>
    %175 = arith.mulf %174, %171 : vector<1x256xf32>
    %c11_43 = arith.constant 11 : index
    %176 = memref.load %arg5[%c11_43] : memref<18xf32, #tpu.memory_space<smem>>
    %177 = vector.broadcast %176 : f32 to vector<1x256xf32>
    %178 = arith.mulf %177, %172 : vector<1x256xf32>
    %179 = arith.addf %175, %178 : vector<1x256xf32>
    %cst_44 = arith.constant 0.000000e+00 : f32
    %180 = vector.broadcast %cst_44 : f32 to vector<1x256xf32>
    %181 = arith.select %23, %179, %180 : vector<1x256xi1>, vector<1x256xf32>
    %182 = arith.addf %170, %181 : vector<1x256xf32>
    %c2_i32_45 = arith.constant 2 : i32
    %183 = tpu.dynamic_rotate %29 by %c2_i32_45 dim 1 : vector<1x256xf32>, i32 -> vector<1x256xf32>
    %c2_i32_46 = arith.constant 2 : i32
    %184 = tpu.dynamic_rotate %33 by %c2_i32_46 dim 1 : vector<1x256xf32>, i32 -> vector<1x256xf32>
    %c3_47 = arith.constant 3 : index
    %185 = memref.load %arg5[%c3_47] : memref<18xf32, #tpu.memory_space<smem>>
    %186 = vector.broadcast %185 : f32 to vector<1x256xf32>
    %187 = arith.mulf %186, %183 : vector<1x256xf32>
    %c12_48 = arith.constant 12 : index
    %188 = memref.load %arg5[%c12_48] : memref<18xf32, #tpu.memory_space<smem>>
    %189 = vector.broadcast %188 : f32 to vector<1x256xf32>
    %190 = arith.mulf %189, %184 : vector<1x256xf32>
    %191 = arith.addf %187, %190 : vector<1x256xf32>
    %cst_49 = arith.constant 0.000000e+00 : f32
    %192 = vector.broadcast %cst_49 : f32 to vector<1x256xf32>
    %193 = arith.select %19, %191, %192 : vector<1x256xi1>, vector<1x256xf32>
    %194 = arith.addf %182, %193 : vector<1x256xf32>
    %c4_50 = arith.constant 4 : index
    %195 = memref.load %arg5[%c4_50] : memref<18xf32, #tpu.memory_space<smem>>
    %196 = vector.broadcast %195 : f32 to vector<1x256xf32>
    %197 = arith.mulf %196, %29 : vector<1x256xf32>
    %c13_51 = arith.constant 13 : index
    %198 = memref.load %arg5[%c13_51] : memref<18xf32, #tpu.memory_space<smem>>
    %199 = vector.broadcast %198 : f32 to vector<1x256xf32>
    %200 = arith.mulf %199, %33 : vector<1x256xf32>
    %201 = arith.addf %197, %200 : vector<1x256xf32>
    %202 = arith.addf %194, %201 : vector<1x256xf32>
    %c254_i32 = arith.constant 254 : i32
    %203 = tpu.dynamic_rotate %29 by %c254_i32 dim 1 : vector<1x256xf32>, i32 -> vector<1x256xf32>
    %c254_i32_52 = arith.constant 254 : i32
    %204 = tpu.dynamic_rotate %33 by %c254_i32_52 dim 1 : vector<1x256xf32>, i32 -> vector<1x256xf32>
    %c5_53 = arith.constant 5 : index
    %205 = memref.load %arg5[%c5_53] : memref<18xf32, #tpu.memory_space<smem>>
    %206 = vector.broadcast %205 : f32 to vector<1x256xf32>
    %207 = arith.mulf %206, %203 : vector<1x256xf32>
    %c14_54 = arith.constant 14 : index
    %208 = memref.load %arg5[%c14_54] : memref<18xf32, #tpu.memory_space<smem>>
    %209 = vector.broadcast %208 : f32 to vector<1x256xf32>
    %210 = arith.mulf %209, %204 : vector<1x256xf32>
    %211 = arith.addf %207, %210 : vector<1x256xf32>
    %cst_55 = arith.constant 0.000000e+00 : f32
    %212 = vector.broadcast %cst_55 : f32 to vector<1x256xf32>
    %213 = arith.select %21, %211, %212 : vector<1x256xi1>, vector<1x256xf32>
    %214 = arith.addf %202, %213 : vector<1x256xf32>
    %c226_i32 = arith.constant 226 : i32
    %215 = tpu.dynamic_rotate %29 by %c226_i32 dim 1 : vector<1x256xf32>, i32 -> vector<1x256xf32>
    %c226_i32_56 = arith.constant 226 : i32
    %216 = tpu.dynamic_rotate %33 by %c226_i32_56 dim 1 : vector<1x256xf32>, i32 -> vector<1x256xf32>
    %c6_57 = arith.constant 6 : index
    %217 = memref.load %arg5[%c6_57] : memref<18xf32, #tpu.memory_space<smem>>
    %218 = vector.broadcast %217 : f32 to vector<1x256xf32>
    %219 = arith.mulf %218, %215 : vector<1x256xf32>
    %c15_58 = arith.constant 15 : index
    %220 = memref.load %arg5[%c15_58] : memref<18xf32, #tpu.memory_space<smem>>
    %221 = vector.broadcast %220 : f32 to vector<1x256xf32>
    %222 = arith.mulf %221, %216 : vector<1x256xf32>
    %223 = arith.addf %219, %222 : vector<1x256xf32>
    %cst_59 = arith.constant 0.000000e+00 : f32
    %224 = vector.broadcast %cst_59 : f32 to vector<1x256xf32>
    %225 = arith.select %24, %223, %224 : vector<1x256xi1>, vector<1x256xf32>
    %226 = arith.addf %214, %225 : vector<1x256xf32>
    %c224_i32_60 = arith.constant 224 : i32
    %227 = tpu.dynamic_rotate %29 by %c224_i32_60 dim 1 : vector<1x256xf32>, i32 -> vector<1x256xf32>
    %c224_i32_61 = arith.constant 224 : i32
    %228 = tpu.dynamic_rotate %33 by %c224_i32_61 dim 1 : vector<1x256xf32>, i32 -> vector<1x256xf32>
    %c7_62 = arith.constant 7 : index
    %229 = memref.load %arg5[%c7_62] : memref<18xf32, #tpu.memory_space<smem>>
    %230 = vector.broadcast %229 : f32 to vector<1x256xf32>
    %231 = arith.mulf %230, %227 : vector<1x256xf32>
    %c16_63 = arith.constant 16 : index
    %232 = memref.load %arg5[%c16_63] : memref<18xf32, #tpu.memory_space<smem>>
    %233 = vector.broadcast %232 : f32 to vector<1x256xf32>
    %234 = arith.mulf %233, %228 : vector<1x256xf32>
    %235 = arith.addf %231, %234 : vector<1x256xf32>
    %cst_64 = arith.constant 0.000000e+00 : f32
    %236 = vector.broadcast %cst_64 : f32 to vector<1x256xf32>
    %237 = arith.select %17, %235, %236 : vector<1x256xi1>, vector<1x256xf32>
    %238 = arith.addf %226, %237 : vector<1x256xf32>
    %c222_i32 = arith.constant 222 : i32
    %239 = tpu.dynamic_rotate %29 by %c222_i32 dim 1 : vector<1x256xf32>, i32 -> vector<1x256xf32>
    %c222_i32_65 = arith.constant 222 : i32
    %240 = tpu.dynamic_rotate %33 by %c222_i32_65 dim 1 : vector<1x256xf32>, i32 -> vector<1x256xf32>
    %c8_66 = arith.constant 8 : index
    %241 = memref.load %arg5[%c8_66] : memref<18xf32, #tpu.memory_space<smem>>
    %242 = vector.broadcast %241 : f32 to vector<1x256xf32>
    %243 = arith.mulf %242, %239 : vector<1x256xf32>
    %c17_67 = arith.constant 17 : index
    %244 = memref.load %arg5[%c17_67] : memref<18xf32, #tpu.memory_space<smem>>
    %245 = vector.broadcast %244 : f32 to vector<1x256xf32>
    %246 = arith.mulf %245, %240 : vector<1x256xf32>
    %247 = arith.addf %243, %246 : vector<1x256xf32>
    %cst_68 = arith.constant 0.000000e+00 : f32
    %248 = vector.broadcast %cst_68 : f32 to vector<1x256xf32>
    %249 = arith.select %25, %247, %248 : vector<1x256xi1>, vector<1x256xf32>
    %250 = arith.addf %238, %249 : vector<1x256xf32>
    %251 = vector.broadcast %250 : vector<1x256xf32> to vector<4x256xf32>
    %252 = arith.mulf %251, %27 : vector<4x256xf32>
    %c0_69 = arith.constant 0 : index
    %c0_70 = arith.constant 0 : index
    %c256 = arith.constant 256 : index
    %253 = vector.load %arg7[%c0_69, %c0_70, %c256] : memref<2x4x512xf32, #tpu.memory_space<vmem>>, vector<1x4x256xf32>
    %254 = vector.shape_cast %253 : vector<1x4x256xf32> to vector<4x256xf32>
    %255 = vector.shape_cast %252 : vector<4x256xf32> to vector<1x4x256xf32>
    tpu.vector_store %arg7[%c0_69, %c0_70, %c256], %255 {strides = array<i32>} : memref<2x4x512xf32, #tpu.memory_space<vmem>>, vector<1x4x256xf32>,
    %c1_71 = arith.constant 1 : index
    %c0_72 = arith.constant 0 : index
    %c0_73 = arith.constant 0 : index
    %256 = vector.load %arg1[%c1_71, %c0_72, %c0_73] : memref<2x4x256xf32, #tpu.memory_space<vmem>>, vector<1x4x256xf32>
    %257 = vector.shape_cast %256 : vector<1x4x256xf32> to vector<4x256xf32>
    %cst_74 = arith.constant dense<0xFF800000> : vector<256xf32>
    %258 = vector.multi_reduction <maximumf>, %257, %cst_74 [0] : vector<4x256xf32> to vector<256xf32>
    %259 = vector.shape_cast %258 : vector<256xf32> to vector<1x256xf32>
    %cst_75 = arith.constant dense<0.000000e+00> : vector<256xf32>
    %260 = vector.multi_reduction <add>, %257, %cst_75 [0] : vector<4x256xf32> to vector<256xf32>
    %261 = vector.shape_cast %260 : vector<256xf32> to vector<1x256xf32>
    %cst_76 = arith.constant 4.000000e+00 : f32
    %262 = vector.broadcast %cst_76 : f32 to vector<1x256xf32>
    %263 = arith.divf %261, %262 : vector<1x256xf32>
    %c0_77 = arith.constant 0 : index
    %264 = memref.load %arg4[%c0_77] : memref<1xf32, #tpu.memory_space<smem>>
    %265 = vector.broadcast %264 : f32 to vector<1x256xf32>
    %c17_i32_78 = arith.constant 17 : i32
    %266 = tpu.dynamic_rotate %259 by %c17_i32_78 dim 1 : vector<1x256xf32>, i32 -> vector<1x256xf32>
    %c17_i32_79 = arith.constant 17 : i32
    %267 = tpu.dynamic_rotate %263 by %c17_i32_79 dim 1 : vector<1x256xf32>, i32 -> vector<1x256xf32>
    %c0_80 = arith.constant 0 : index
    %268 = memref.load %arg3[%c0_80] : memref<18xf32, #tpu.memory_space<smem>>
    %269 = vector.broadcast %268 : f32 to vector<1x256xf32>
    %270 = arith.mulf %269, %266 : vector<1x256xf32>
    %c9_81 = arith.constant 9 : index
    %271 = memref.load %arg3[%c9_81] : memref<18xf32, #tpu.memory_space<smem>>
    %272 = vector.broadcast %271 : f32 to vector<1x256xf32>
    %273 = arith.mulf %272, %267 : vector<1x256xf32>
    %274 = arith.addf %270, %273 : vector<1x256xf32>
    %cst_82 = arith.constant 0.000000e+00 : f32
    %275 = vector.broadcast %cst_82 : f32 to vector<1x256xf32>
    %276 = arith.select %10, %274, %275 : vector<1x256xi1>, vector<1x256xf32>
    %277 = arith.addf %265, %276 : vector<1x256xf32>
    %c16_i32_83 = arith.constant 16 : i32
    %278 = tpu.dynamic_rotate %259 by %c16_i32_83 dim 1 : vector<1x256xf32>, i32 -> vector<1x256xf32>
    %c16_i32_84 = arith.constant 16 : i32
    %279 = tpu.dynamic_rotate %263 by %c16_i32_84 dim 1 : vector<1x256xf32>, i32 -> vector<1x256xf32>
    %c1_85 = arith.constant 1 : index
    %280 = memref.load %arg3[%c1_85] : memref<18xf32, #tpu.memory_space<smem>>
    %281 = vector.broadcast %280 : f32 to vector<1x256xf32>
    %282 = arith.mulf %281, %278 : vector<1x256xf32>
    %c10_86 = arith.constant 10 : index
    %283 = memref.load %arg3[%c10_86] : memref<18xf32, #tpu.memory_space<smem>>
    %284 = vector.broadcast %283 : f32 to vector<1x256xf32>
    %285 = arith.mulf %284, %279 : vector<1x256xf32>
    %286 = arith.addf %282, %285 : vector<1x256xf32>
    %cst_87 = arith.constant 0.000000e+00 : f32
    %287 = vector.broadcast %cst_87 : f32 to vector<1x256xf32>
    %288 = arith.select %3, %286, %287 : vector<1x256xi1>, vector<1x256xf32>
    %289 = arith.addf %277, %288 : vector<1x256xf32>
    %c15_i32_88 = arith.constant 15 : i32
    %290 = tpu.dynamic_rotate %259 by %c15_i32_88 dim 1 : vector<1x256xf32>, i32 -> vector<1x256xf32>
    %c15_i32_89 = arith.constant 15 : i32
    %291 = tpu.dynamic_rotate %263 by %c15_i32_89 dim 1 : vector<1x256xf32>, i32 -> vector<1x256xf32>
    %c2_90 = arith.constant 2 : index
    %292 = memref.load %arg3[%c2_90] : memref<18xf32, #tpu.memory_space<smem>>
    %293 = vector.broadcast %292 : f32 to vector<1x256xf32>
    %294 = arith.mulf %293, %290 : vector<1x256xf32>
    %c11_91 = arith.constant 11 : index
    %295 = memref.load %arg3[%c11_91] : memref<18xf32, #tpu.memory_space<smem>>
    %296 = vector.broadcast %295 : f32 to vector<1x256xf32>
    %297 = arith.mulf %296, %291 : vector<1x256xf32>
    %298 = arith.addf %294, %297 : vector<1x256xf32>
    %cst_92 = arith.constant 0.000000e+00 : f32
    %299 = vector.broadcast %cst_92 : f32 to vector<1x256xf32>
    %300 = arith.select %11, %298, %299 : vector<1x256xi1>, vector<1x256xf32>
    %301 = arith.addf %289, %300 : vector<1x256xf32>
    %c1_i32_93 = arith.constant 1 : i32
    %302 = tpu.dynamic_rotate %259 by %c1_i32_93 dim 1 : vector<1x256xf32>, i32 -> vector<1x256xf32>
    %c1_i32_94 = arith.constant 1 : i32
    %303 = tpu.dynamic_rotate %263 by %c1_i32_94 dim 1 : vector<1x256xf32>, i32 -> vector<1x256xf32>
    %c3_95 = arith.constant 3 : index
    %304 = memref.load %arg3[%c3_95] : memref<18xf32, #tpu.memory_space<smem>>
    %305 = vector.broadcast %304 : f32 to vector<1x256xf32>
    %306 = arith.mulf %305, %302 : vector<1x256xf32>
    %c12_96 = arith.constant 12 : index
    %307 = memref.load %arg3[%c12_96] : memref<18xf32, #tpu.memory_space<smem>>
    %308 = vector.broadcast %307 : f32 to vector<1x256xf32>
    %309 = arith.mulf %308, %303 : vector<1x256xf32>
    %310 = arith.addf %306, %309 : vector<1x256xf32>
    %cst_97 = arith.constant 0.000000e+00 : f32
    %311 = vector.broadcast %cst_97 : f32 to vector<1x256xf32>
    %312 = arith.select %7, %310, %311 : vector<1x256xi1>, vector<1x256xf32>
    %313 = arith.addf %301, %312 : vector<1x256xf32>
    %c4_98 = arith.constant 4 : index
    %314 = memref.load %arg3[%c4_98] : memref<18xf32, #tpu.memory_space<smem>>
    %315 = vector.broadcast %314 : f32 to vector<1x256xf32>
    %316 = arith.mulf %315, %259 : vector<1x256xf32>
    %c13_99 = arith.constant 13 : index
    %317 = memref.load %arg3[%c13_99] : memref<18xf32, #tpu.memory_space<smem>>
    %318 = vector.broadcast %317 : f32 to vector<1x256xf32>
    %319 = arith.mulf %318, %263 : vector<1x256xf32>
    %320 = arith.addf %316, %319 : vector<1x256xf32>
    %321 = arith.addf %313, %320 : vector<1x256xf32>
    %c255_i32_100 = arith.constant 255 : i32
    %322 = tpu.dynamic_rotate %259 by %c255_i32_100 dim 1 : vector<1x256xf32>, i32 -> vector<1x256xf32>
    %c255_i32_101 = arith.constant 255 : i32
    %323 = tpu.dynamic_rotate %263 by %c255_i32_101 dim 1 : vector<1x256xf32>, i32 -> vector<1x256xf32>
    %c5_102 = arith.constant 5 : index
    %324 = memref.load %arg3[%c5_102] : memref<18xf32, #tpu.memory_space<smem>>
    %325 = vector.broadcast %324 : f32 to vector<1x256xf32>
    %326 = arith.mulf %325, %322 : vector<1x256xf32>
    %c14_103 = arith.constant 14 : index
    %327 = memref.load %arg3[%c14_103] : memref<18xf32, #tpu.memory_space<smem>>
    %328 = vector.broadcast %327 : f32 to vector<1x256xf32>
    %329 = arith.mulf %328, %323 : vector<1x256xf32>
    %330 = arith.addf %326, %329 : vector<1x256xf32>
    %cst_104 = arith.constant 0.000000e+00 : f32
    %331 = vector.broadcast %cst_104 : f32 to vector<1x256xf32>
    %332 = arith.select %9, %330, %331 : vector<1x256xi1>, vector<1x256xf32>
    %333 = arith.addf %321, %332 : vector<1x256xf32>
    %c241_i32_105 = arith.constant 241 : i32
    %334 = tpu.dynamic_rotate %259 by %c241_i32_105 dim 1 : vector<1x256xf32>, i32 -> vector<1x256xf32>
    %c241_i32_106 = arith.constant 241 : i32
    %335 = tpu.dynamic_rotate %263 by %c241_i32_106 dim 1 : vector<1x256xf32>, i32 -> vector<1x256xf32>
    %c6_107 = arith.constant 6 : index
    %336 = memref.load %arg3[%c6_107] : memref<18xf32, #tpu.memory_space<smem>>
    %337 = vector.broadcast %336 : f32 to vector<1x256xf32>
    %338 = arith.mulf %337, %334 : vector<1x256xf32>
    %c15_108 = arith.constant 15 : index
    %339 = memref.load %arg3[%c15_108] : memref<18xf32, #tpu.memory_space<smem>>
    %340 = vector.broadcast %339 : f32 to vector<1x256xf32>
    %341 = arith.mulf %340, %335 : vector<1x256xf32>
    %342 = arith.addf %338, %341 : vector<1x256xf32>
    %cst_109 = arith.constant 0.000000e+00 : f32
    %343 = vector.broadcast %cst_109 : f32 to vector<1x256xf32>
    %344 = arith.select %12, %342, %343 : vector<1x256xi1>, vector<1x256xf32>
    %345 = arith.addf %333, %344 : vector<1x256xf32>
    %c240_i32_110 = arith.constant 240 : i32
    %346 = tpu.dynamic_rotate %259 by %c240_i32_110 dim 1 : vector<1x256xf32>, i32 -> vector<1x256xf32>
    %c240_i32_111 = arith.constant 240 : i32
    %347 = tpu.dynamic_rotate %263 by %c240_i32_111 dim 1 : vector<1x256xf32>, i32 -> vector<1x256xf32>
    %c7_112 = arith.constant 7 : index
    %348 = memref.load %arg3[%c7_112] : memref<18xf32, #tpu.memory_space<smem>>
    %349 = vector.broadcast %348 : f32 to vector<1x256xf32>
    %350 = arith.mulf %349, %346 : vector<1x256xf32>
    %c16_113 = arith.constant 16 : index
    %351 = memref.load %arg3[%c16_113] : memref<18xf32, #tpu.memory_space<smem>>
    %352 = vector.broadcast %351 : f32 to vector<1x256xf32>
    %353 = arith.mulf %352, %347 : vector<1x256xf32>
    %354 = arith.addf %350, %353 : vector<1x256xf32>
    %cst_114 = arith.constant 0.000000e+00 : f32
    %355 = vector.broadcast %cst_114 : f32 to vector<1x256xf32>
    %356 = arith.select %5, %354, %355 : vector<1x256xi1>, vector<1x256xf32>
    %357 = arith.addf %345, %356 : vector<1x256xf32>
    %c239_i32_115 = arith.constant 239 : i32
    %358 = tpu.dynamic_rotate %259 by %c239_i32_115 dim 1 : vector<1x256xf32>, i32 -> vector<1x256xf32>
    %c239_i32_116 = arith.constant 239 : i32
    %359 = tpu.dynamic_rotate %263 by %c239_i32_116 dim 1 : vector<1x256xf32>, i32 -> vector<1x256xf32>
    %c8_117 = arith.constant 8 : index
    %360 = memref.load %arg3[%c8_117] : memref<18xf32, #tpu.memory_space<smem>>
    %361 = vector.broadcast %360 : f32 to vector<1x256xf32>
    %362 = arith.mulf %361, %358 : vector<1x256xf32>
    %c17_118 = arith.constant 17 : index
    %363 = memref.load %arg3[%c17_118] : memref<18xf32, #tpu.memory_space<smem>>
    %364 = vector.broadcast %363 : f32 to vector<1x256xf32>
    %365 = arith.mulf %364, %359 : vector<1x256xf32>
    %366 = arith.addf %362, %365 : vector<1x256xf32>
    %cst_119 = arith.constant 0.000000e+00 : f32
    %367 = vector.broadcast %cst_119 : f32 to vector<1x256xf32>
    %368 = arith.select %13, %366, %367 : vector<1x256xi1>, vector<1x256xf32>
    %369 = arith.addf %357, %368 : vector<1x256xf32>
    %370 = vector.broadcast %369 : vector<1x256xf32> to vector<4x256xf32>
    %371 = arith.mulf %370, %257 : vector<4x256xf32>
    %c1_120 = arith.constant 1 : index
    %c0_121 = arith.constant 0 : index
    %c0_122 = arith.constant 0 : index
    %372 = vector.load %arg7[%c1_120, %c0_121, %c0_122] : memref<2x4x512xf32, #tpu.memory_space<vmem>>, vector<1x4x256xf32>
    %373 = vector.shape_cast %372 : vector<1x4x256xf32> to vector<4x256xf32>
    %374 = vector.shape_cast %371 : vector<4x256xf32> to vector<1x4x256xf32>
    tpu.vector_store %arg7[%c1_120, %c0_121, %c0_122], %374 {strides = array<i32>} : memref<2x4x512xf32, #tpu.memory_space<vmem>>, vector<1x4x256xf32>,
    %c0_123 = arith.constant 0 : index
    %375 = memref.load %arg6[%c0_123] : memref<1xf32, #tpu.memory_space<smem>>
    %376 = vector.broadcast %375 : f32 to vector<1x256xf32>
    %c34_i32_124 = arith.constant 34 : i32
    %377 = tpu.dynamic_rotate %259 by %c34_i32_124 dim 1 : vector<1x256xf32>, i32 -> vector<1x256xf32>
    %c34_i32_125 = arith.constant 34 : i32
    %378 = tpu.dynamic_rotate %263 by %c34_i32_125 dim 1 : vector<1x256xf32>, i32 -> vector<1x256xf32>
    %c0_126 = arith.constant 0 : index
    %379 = memref.load %arg5[%c0_126] : memref<18xf32, #tpu.memory_space<smem>>
    %380 = vector.broadcast %379 : f32 to vector<1x256xf32>
    %381 = arith.mulf %380, %377 : vector<1x256xf32>
    %c9_127 = arith.constant 9 : index
    %382 = memref.load %arg5[%c9_127] : memref<18xf32, #tpu.memory_space<smem>>
    %383 = vector.broadcast %382 : f32 to vector<1x256xf32>
    %384 = arith.mulf %383, %378 : vector<1x256xf32>
    %385 = arith.addf %381, %384 : vector<1x256xf32>
    %cst_128 = arith.constant 0.000000e+00 : f32
    %386 = vector.broadcast %cst_128 : f32 to vector<1x256xf32>
    %387 = arith.select %22, %385, %386 : vector<1x256xi1>, vector<1x256xf32>
    %388 = arith.addf %376, %387 : vector<1x256xf32>
    %c32_i32_129 = arith.constant 32 : i32
    %389 = tpu.dynamic_rotate %259 by %c32_i32_129 dim 1 : vector<1x256xf32>, i32 -> vector<1x256xf32>
    %c32_i32_130 = arith.constant 32 : i32
    %390 = tpu.dynamic_rotate %263 by %c32_i32_130 dim 1 : vector<1x256xf32>, i32 -> vector<1x256xf32>
    %c1_131 = arith.constant 1 : index
    %391 = memref.load %arg5[%c1_131] : memref<18xf32, #tpu.memory_space<smem>>
    %392 = vector.broadcast %391 : f32 to vector<1x256xf32>
    %393 = arith.mulf %392, %389 : vector<1x256xf32>
    %c10_132 = arith.constant 10 : index
    %394 = memref.load %arg5[%c10_132] : memref<18xf32, #tpu.memory_space<smem>>
    %395 = vector.broadcast %394 : f32 to vector<1x256xf32>
    %396 = arith.mulf %395, %390 : vector<1x256xf32>
    %397 = arith.addf %393, %396 : vector<1x256xf32>
    %cst_133 = arith.constant 0.000000e+00 : f32
    %398 = vector.broadcast %cst_133 : f32 to vector<1x256xf32>
    %399 = arith.select %15, %397, %398 : vector<1x256xi1>, vector<1x256xf32>
    %400 = arith.addf %388, %399 : vector<1x256xf32>
    %c30_i32_134 = arith.constant 30 : i32
    %401 = tpu.dynamic_rotate %259 by %c30_i32_134 dim 1 : vector<1x256xf32>, i32 -> vector<1x256xf32>
    %c30_i32_135 = arith.constant 30 : i32
    %402 = tpu.dynamic_rotate %263 by %c30_i32_135 dim 1 : vector<1x256xf32>, i32 -> vector<1x256xf32>
    %c2_136 = arith.constant 2 : index
    %403 = memref.load %arg5[%c2_136] : memref<18xf32, #tpu.memory_space<smem>>
    %404 = vector.broadcast %403 : f32 to vector<1x256xf32>
    %405 = arith.mulf %404, %401 : vector<1x256xf32>
    %c11_137 = arith.constant 11 : index
    %406 = memref.load %arg5[%c11_137] : memref<18xf32, #tpu.memory_space<smem>>
    %407 = vector.broadcast %406 : f32 to vector<1x256xf32>
    %408 = arith.mulf %407, %402 : vector<1x256xf32>
    %409 = arith.addf %405, %408 : vector<1x256xf32>
    %cst_138 = arith.constant 0.000000e+00 : f32
    %410 = vector.broadcast %cst_138 : f32 to vector<1x256xf32>
    %411 = arith.select %23, %409, %410 : vector<1x256xi1>, vector<1x256xf32>
    %412 = arith.addf %400, %411 : vector<1x256xf32>
    %c2_i32_139 = arith.constant 2 : i32
    %413 = tpu.dynamic_rotate %259 by %c2_i32_139 dim 1 : vector<1x256xf32>, i32 -> vector<1x256xf32>
    %c2_i32_140 = arith.constant 2 : i32
    %414 = tpu.dynamic_rotate %263 by %c2_i32_140 dim 1 : vector<1x256xf32>, i32 -> vector<1x256xf32>
    %c3_141 = arith.constant 3 : index
    %415 = memref.load %arg5[%c3_141] : memref<18xf32, #tpu.memory_space<smem>>
    %416 = vector.broadcast %415 : f32 to vector<1x256xf32>
    %417 = arith.mulf %416, %413 : vector<1x256xf32>
    %c12_142 = arith.constant 12 : index
    %418 = memref.load %arg5[%c12_142] : memref<18xf32, #tpu.memory_space<smem>>
    %419 = vector.broadcast %418 : f32 to vector<1x256xf32>
    %420 = arith.mulf %419, %414 : vector<1x256xf32>
    %421 = arith.addf %417, %420 : vector<1x256xf32>
    %cst_143 = arith.constant 0.000000e+00 : f32
    %422 = vector.broadcast %cst_143 : f32 to vector<1x256xf32>
    %423 = arith.select %19, %421, %422 : vector<1x256xi1>, vector<1x256xf32>
    %424 = arith.addf %412, %423 : vector<1x256xf32>
    %c4_144 = arith.constant 4 : index
    %425 = memref.load %arg5[%c4_144] : memref<18xf32, #tpu.memory_space<smem>>
    %426 = vector.broadcast %425 : f32 to vector<1x256xf32>
    %427 = arith.mulf %426, %259 : vector<1x256xf32>
    %c13_145 = arith.constant 13 : index
    %428 = memref.load %arg5[%c13_145] : memref<18xf32, #tpu.memory_space<smem>>
    %429 = vector.broadcast %428 : f32 to vector<1x256xf32>
    %430 = arith.mulf %429, %263 : vector<1x256xf32>
    %431 = arith.addf %427, %430 : vector<1x256xf32>
    %432 = arith.addf %424, %431 : vector<1x256xf32>
    %c254_i32_146 = arith.constant 254 : i32
    %433 = tpu.dynamic_rotate %259 by %c254_i32_146 dim 1 : vector<1x256xf32>, i32 -> vector<1x256xf32>
    %c254_i32_147 = arith.constant 254 : i32
    %434 = tpu.dynamic_rotate %263 by %c254_i32_147 dim 1 : vector<1x256xf32>, i32 -> vector<1x256xf32>
    %c5_148 = arith.constant 5 : index
    %435 = memref.load %arg5[%c5_148] : memref<18xf32, #tpu.memory_space<smem>>
    %436 = vector.broadcast %435 : f32 to vector<1x256xf32>
    %437 = arith.mulf %436, %433 : vector<1x256xf32>
    %c14_149 = arith.constant 14 : index
    %438 = memref.load %arg5[%c14_149] : memref<18xf32, #tpu.memory_space<smem>>
    %439 = vector.broadcast %438 : f32 to vector<1x256xf32>
    %440 = arith.mulf %439, %434 : vector<1x256xf32>
    %441 = arith.addf %437, %440 : vector<1x256xf32>
    %cst_150 = arith.constant 0.000000e+00 : f32
    %442 = vector.broadcast %cst_150 : f32 to vector<1x256xf32>
    %443 = arith.select %21, %441, %442 : vector<1x256xi1>, vector<1x256xf32>
    %444 = arith.addf %432, %443 : vector<1x256xf32>
    %c226_i32_151 = arith.constant 226 : i32
    %445 = tpu.dynamic_rotate %259 by %c226_i32_151 dim 1 : vector<1x256xf32>, i32 -> vector<1x256xf32>
    %c226_i32_152 = arith.constant 226 : i32
    %446 = tpu.dynamic_rotate %263 by %c226_i32_152 dim 1 : vector<1x256xf32>, i32 -> vector<1x256xf32>
    %c6_153 = arith.constant 6 : index
    %447 = memref.load %arg5[%c6_153] : memref<18xf32, #tpu.memory_space<smem>>
    %448 = vector.broadcast %447 : f32 to vector<1x256xf32>
    %449 = arith.mulf %448, %445 : vector<1x256xf32>
    %c15_154 = arith.constant 15 : index
    %450 = memref.load %arg5[%c15_154] : memref<18xf32, #tpu.memory_space<smem>>
    %451 = vector.broadcast %450 : f32 to vector<1x256xf32>
    %452 = arith.mulf %451, %446 : vector<1x256xf32>
    %453 = arith.addf %449, %452 : vector<1x256xf32>
    %cst_155 = arith.constant 0.000000e+00 : f32
    %454 = vector.broadcast %cst_155 : f32 to vector<1x256xf32>
    %455 = arith.select %24, %453, %454 : vector<1x256xi1>, vector<1x256xf32>
    %456 = arith.addf %444, %455 : vector<1x256xf32>
    %c224_i32_156 = arith.constant 224 : i32
    %457 = tpu.dynamic_rotate %259 by %c224_i32_156 dim 1 : vector<1x256xf32>, i32 -> vector<1x256xf32>
    %c224_i32_157 = arith.constant 224 : i32
    %458 = tpu.dynamic_rotate %263 by %c224_i32_157 dim 1 : vector<1x256xf32>, i32 -> vector<1x256xf32>
    %c7_158 = arith.constant 7 : index
    %459 = memref.load %arg5[%c7_158] : memref<18xf32, #tpu.memory_space<smem>>
    %460 = vector.broadcast %459 : f32 to vector<1x256xf32>
    %461 = arith.mulf %460, %457 : vector<1x256xf32>
    %c16_159 = arith.constant 16 : index
    %462 = memref.load %arg5[%c16_159] : memref<18xf32, #tpu.memory_space<smem>>
    %463 = vector.broadcast %462 : f32 to vector<1x256xf32>
    %464 = arith.mulf %463, %458 : vector<1x256xf32>
    %465 = arith.addf %461, %464 : vector<1x256xf32>
    %cst_160 = arith.constant 0.000000e+00 : f32
    %466 = vector.broadcast %cst_160 : f32 to vector<1x256xf32>
    %467 = arith.select %17, %465, %466 : vector<1x256xi1>, vector<1x256xf32>
    %468 = arith.addf %456, %467 : vector<1x256xf32>
    %c222_i32_161 = arith.constant 222 : i32
    %469 = tpu.dynamic_rotate %259 by %c222_i32_161 dim 1 : vector<1x256xf32>, i32 -> vector<1x256xf32>
    %c222_i32_162 = arith.constant 222 : i32
    %470 = tpu.dynamic_rotate %263 by %c222_i32_162 dim 1 : vector<1x256xf32>, i32 -> vector<1x256xf32>
    %c8_163 = arith.constant 8 : index
    %471 = memref.load %arg5[%c8_163] : memref<18xf32, #tpu.memory_space<smem>>
    %472 = vector.broadcast %471 : f32 to vector<1x256xf32>
    %473 = arith.mulf %472, %469 : vector<1x256xf32>
    %c17_164 = arith.constant 17 : index
    %474 = memref.load %arg5[%c17_164] : memref<18xf32, #tpu.memory_space<smem>>
    %475 = vector.broadcast %474 : f32 to vector<1x256xf32>
    %476 = arith.mulf %475, %470 : vector<1x256xf32>
    %477 = arith.addf %473, %476 : vector<1x256xf32>
    %cst_165 = arith.constant 0.000000e+00 : f32
    %478 = vector.broadcast %cst_165 : f32 to vector<1x256xf32>
    %479 = arith.select %25, %477, %478 : vector<1x256xi1>, vector<1x256xf32>
    %480 = arith.addf %468, %479 : vector<1x256xf32>
    %481 = vector.broadcast %480 : vector<1x256xf32> to vector<4x256xf32>
    %482 = arith.mulf %481, %257 : vector<4x256xf32>
    %c1_166 = arith.constant 1 : index
    %c0_167 = arith.constant 0 : index
    %c256_168 = arith.constant 256 : index
    %483 = vector.load %arg7[%c1_166, %c0_167, %c256_168] : memref<2x4x512xf32, #tpu.memory_space<vmem>>, vector<1x4x256xf32>
    %484 = vector.shape_cast %483 : vector<1x4x256xf32> to vector<4x256xf32>
    %485 = vector.shape_cast %482 : vector<4x256xf32> to vector<1x4x256xf32>
    tpu.vector_store %arg7[%c1_166, %c0_167, %c256_168], %485 {strides = array<i32>} : memref<2x4x512xf32, #tpu.memory_space<vmem>>, vector<1x4x256xf32>,
    return
  }
  func.func @transform_0(%arg0: i32) -> (i32, i32, i32) {
    %c0_i32 = arith.constant 0 : i32
    %c0_i32_0 = arith.constant 0 : i32
    %c0_i32_1 = arith.constant 0 : i32
    return %arg0, %c0_i32, %c0_i32_0 : i32, i32, i32
  }
  func.func @transform_1(%arg0: i32) -> (i32, i32) {
    %c0_i32 = arith.constant 0 : i32
    %c0_i32_0 = arith.constant 0 : i32
    %c0_i32_1 = arith.constant 0 : i32
    return %c0_i32, %c0_i32_0 : i32, i32
  }
  func.func @transform_2(%arg0: i32) -> i32 {
    %c0_i32 = arith.constant 0 : i32
    %c0_i32_0 = arith.constant 0 : i32
    return %c0_i32 : i32
  }
  func.func @transform_3(%arg0: i32) -> i32 {
    %c0_i32 = arith.constant 0 : i32
    %c0_i32_0 = arith.constant 0 : i32
    return %c0_i32 : i32
  }
  func.func @transform_4(%arg0: i32) -> i32 {
    %c0_i32 = arith.constant 0 : i32
    %c0_i32_0 = arith.constant 0 : i32
    return %c0_i32 : i32
  }
  func.func @transform_5(%arg0: i32) -> i32 {
    %c0_i32 = arith.constant 0 : i32
    %c0_i32_0 = arith.constant 0 : i32
    return %c0_i32 : i32
  }
  func.func @transform_6(%arg0: i32) -> (i32, i32, i32) {
    %c0_i32 = arith.constant 0 : i32
    %c0_i32_0 = arith.constant 0 : i32
    %c0_i32_1 = arith.constant 0 : i32
    return %arg0, %c0_i32, %c0_i32_0 : i32, i32, i32
  }
}

</mosaic_0001>

<llo_original>
// kernel: tpu_custom_call.1
$region0: #{tpu_custom_call.1}
  #allocation0 [shape = 'u32[]', space=smem, size = 0x4, offset = 0x4, fixed_abs, tag = 'smem constant byte address 0x4 - core index']
  #allocation1 [shape = 'u32[144,128]{1,0:T(1,128)}', space=vmem, size = 0x12000, scoped, tag = 'internal scratch']
  #allocation2 [shape = 'f32[1]{0:T(128)S(6)}', space=smem, size = 0x200, scoped, tag = 'scoped memory for tpu_custom_call.1']
  #allocation3 [shape = 'f32[1]{0:T(128)S(6)}', space=smem, size = 0x200, scoped, tag = 'scoped memory for tpu_custom_call.1']
  %s0 = inlined_call_operand.hbm [shape: f32[2,4,256], index: 0, kind: input, shape index: {}]
  %s1 = inlined_call_operand.vmem [shape: s32[1,256], index: 1, kind: input, shape index: {}]
  %s2 = inlined_call_operand.vmem [shape: f32[18], index: 2, kind: input, shape index: {}]
  %s3 = inlined_call_operand.<no memory space> [shape: f32[1], index: 3, kind: input, shape index: {}]
  %s4 = inlined_call_operand.vmem [shape: f32[18], index: 4, kind: input, shape index: {}]
  %s5 = inlined_call_operand.<no memory space> [shape: f32[1], index: 5, kind: input, shape index: {}]
  %s6 = inlined_call_operand.hbm [shape: f32[2,4,512], index: 6, kind: output, shape index: {}]
  %s7 = sld [smem:[#allocation0]]
  $region46: #{tpu_custom_call.1} parent=0
    _
  %s9 = ssub.s32 1, %s7
  %s10 = scalar_select 0, %s9, %s7
  %11 = sst [smem:[#allocation2]] %s3
  %12 = sst [smem:[#allocation3]] %s5
  $region1: #{tpu_custom_call.1} parent=0
    #allocation4 [shape = 'u8[8192]{0}', space=vmem, size = 0x2000, scoped, tag = 'input window, operand 0, single buffered']
    #allocation5 [shape = 's32[1]{0}', space=sflag, size = 0x4, scoped, tag = 'scoped memory for tpu_custom_call.1']
    #allocation6 [shape = 's32[1]{0}', space=sflag, size = 0x4, scoped, tag = 'scoped memory for tpu_custom_call.1']
    #allocation7 [shape = 's32[1]{0}', space=sflag, size = 0x4, scoped, tag = 'scoped memory for tpu_custom_call.1']
    #allocation8 [shape = 'u8[512]{0}', space=smem, size = 0x200, scoped, tag = 'input window, operand 2, single buffered']
    #allocation9 [shape = 'u8[512]{0}', space=smem, size = 0x200, scoped, tag = 'input window, operand 4, single buffered']
    #allocation10 [shape = 's32[1]{0}', space=sflag, size = 0x4, scoped, tag = 'scoped memory for tpu_custom_call.1']
    #allocation11 [shape = 'u8[16384]{0}', space=vmem, size = 0x4000, scoped, tag = 'output window, operand 0, single buffered']
    %13 = vsyncpa [#allocation5], 0
    %14 = vsyncpa [#allocation7], 0
    %15 = vsyncpa [#allocation10], 0
    %16 = vsyncpa [#allocation6], 0
    // Predicated region
    $region2: #{tpu_custom_call.1} parent=1 // pred_check
      _
    $region3: #{tpu_custom_call.1} parent=1 // pred_check_branch
      %18 = sbr.rel (0) target = $region5
    $region4: #{tpu_custom_call.1} parent=1 // pred_region
      %s20 = ssub.s32 256, 256
      %21 = vsyncadd [#allocation5], %s20
      %s22 = sshll.u32 [#allocation4], 4
      %s23 = int_to_ptr.vmem [resolvable:$true] %s22
      %28 = dma.hbm_to_vmem [thread:$0]  %s0, 256, %s23, [#allocation5], 128, 128, 8
    $region5: #{tpu_custom_call.1} parent=1 // pred_fallthru
      _
    // Predicated region
    $region6: #{tpu_custom_call.1} parent=1 // pred_check
      _
    $region7: #{tpu_custom_call.1} parent=1 // pred_check_branch
      %30 = sbr.rel (0) target = $region9
    $region8: #{tpu_custom_call.1} parent=1 // pred_region
      _
    $region9: #{tpu_custom_call.1} parent=1 // pred_fallthru
      _
    // Predicated region
    $region10: #{tpu_custom_call.1} parent=1 // pred_check
      _
    $region11: #{tpu_custom_call.1} parent=1 // pred_check_branch
      %32 = sbr.rel (0) target = $region13
    $region12: #{tpu_custom_call.1} parent=1 // pred_region
      %s34 = ssub.s32 16, 16
      %35 = vsyncadd [#allocation7], %s34
      %s37 = sshll.u32 %s2, 4
      %s38 = int_to_ptr.vmem [resolvable:$true] %s37
      %40 = dma.vmem_to_smem %s38, 16, [#allocation8], [#allocation7]
    $region13: #{tpu_custom_call.1} parent=1 // pred_fallthru
      _
    // Predicated region
    $region14: #{tpu_custom_call.1} parent=1 // pred_check
      _
    $region15: #{tpu_custom_call.1} parent=1 // pred_check_branch
      %42 = sbr.rel (0) target = $region17
    $region16: #{tpu_custom_call.1} parent=1 // pred_region
      _
    $region17: #{tpu_custom_call.1} parent=1 // pred_fallthru
      _
    // Predicated region
    $region18: #{tpu_custom_call.1} parent=1 // pred_check
      _
    $region19: #{tpu_custom_call.1} parent=1 // pred_check_branch
      %44 = sbr.rel (0) target = $region21
    $region20: #{tpu_custom_call.1} parent=1 // pred_region
      %s46 = ssub.s32 16, 16
      %47 = vsyncadd [#allocation10], %s46
      %s49 = sshll.u32 %s4, 4
      %s50 = int_to_ptr.vmem [resolvable:$true] %s49
      %52 = dma.vmem_to_smem %s50, 16, [#allocation9], [#allocation10]
    $region21: #{tpu_custom_call.1} parent=1 // pred_fallthru
      _
    // Predicated region
    $region22: #{tpu_custom_call.1} parent=1 // pred_check
      _
    $region23: #{tpu_custom_call.1} parent=1 // pred_check_branch
      %54 = sbr.rel (0) target = $region25
    $region24: #{tpu_custom_call.1} parent=1 // pred_region
      _
    $region25: #{tpu_custom_call.1} parent=1 // pred_fallthru
      _
    // Predicated region
    $region26: #{tpu_custom_call.1} parent=1 // pred_check
      _
    $region27: #{tpu_custom_call.1} parent=1 // pred_check_branch
      %56 = sbr.rel (0) target = $region29
    $region28: #{tpu_custom_call.1} parent=1 // pred_region
      %57 = dma.done [#allocation5], 256
    $region29: #{tpu_custom_call.1} parent=1 // pred_fallthru
      _
    // Predicated region
    $region30: #{tpu_custom_call.1} parent=1 // pred_check
      _
    $region31: #{tpu_custom_call.1} parent=1 // pred_check_branch
      %59 = sbr.rel (0) target = $region33
    $region32: #{tpu_custom_call.1} parent=1 // pred_region
      %60 = dma.done [#allocation7], 16
    $region33: #{tpu_custom_call.1} parent=1 // pred_fallthru
      _
    // Predicated region
    $region34: #{tpu_custom_call.1} parent=1 // pred_check
      _
    $region35: #{tpu_custom_call.1} parent=1 // pred_check_branch
      %62 = sbr.rel (0) target = $region37
    $region36: #{tpu_custom_call.1} parent=1 // pred_region
      %63 = dma.done [#allocation10], 16
    $region37: #{tpu_custom_call.1} parent=1 // pred_fallthru
      _
    %64 = sfence
    %v65 = vld [vmem:[%s1] sm:$0x3]
    %v66 = vlaneseq
    %v67 = vand.u32 %v66, 127
    %v68 = vadd.s32 %v67, 128
    %vm69 = vcmp.ge.s32.totalorder %v67, 16
    %vm70 = vcmp.ge.s32.totalorder %v68, 16
    %vm71 = vcmp.lt.s32.totalorder %v67, 240
    %vm72 = vcmp.lt.s32.totalorder %v68, 240
    %vm73 = vcmp.ge.s32.totalorder %v65, 1
    %vm74 = vcmp.lt.s32.totalorder %v65, 15
    %v75 = vsel %vm73, 1, 0
    %v76 = vlaneseq
    %v77 = vshrl.u32 %v76, 7
    %v78 = vsub.s32 0, %v77
    %v79 = vrot.slane %v75, %v78
    %v80 = vlaneseq
    %v81 = vshrl.u32 %v80, 7
    %v82 = vsub.s32 1, %v81
    %v83 = vrot.slane %v75, %v82
    %vm84 = vcmp.ne.s32.totalorder %v79, 0
    %vm85 = vcmp.ne.s32.totalorder %v83, 0
    %vm86 = vmand %vm69, %vm84
    %vm87 = vmand %vm70, %vm85
    %v88 = vsel %vm74, 1, 0
    %v89 = vlaneseq
    %v90 = vshrl.u32 %v89, 7
    %v91 = vsub.s32 0, %v90
    %v92 = vrot.slane %v88, %v91
    %v93 = vlaneseq
    %v94 = vshrl.u32 %v93, 7
    %v95 = vsub.s32 1, %v94
    %v96 = vrot.slane %v88, %v95
    %vm97 = vcmp.ne.s32.totalorder %v92, 0
    %vm98 = vcmp.ne.s32.totalorder %v96, 0
    %vm99 = vmand %vm69, %vm97
    %vm100 = vmand %vm70, %vm98
    %vm101 = vmand %vm71, %vm84
    %vm102 = vmand %vm72, %vm85
    %vm103 = vmand %vm71, %vm97
    %vm104 = vmand %vm72, %vm98
    %vm105 = vcmp.ge.s32.totalorder %v67, 32
    %vm106 = vcmp.ge.s32.totalorder %v68, 32
    %vm107 = vcmp.lt.s32.totalorder %v67, 224
    %vm108 = vcmp.lt.s32.totalorder %v68, 224
    %vm109 = vcmp.ge.s32.totalorder %v65, 2
    %vm110 = vcmp.lt.s32.totalorder %v65, 14
    %v111 = vsel %vm109, 1, 0
    %v112 = vlaneseq
    %v113 = vshrl.u32 %v112, 7
    %v114 = vsub.s32 0, %v113
    %v115 = vrot.slane %v111, %v114
    %v116 = vlaneseq
    %v117 = vshrl.u32 %v116, 7
    %v118 = vsub.s32 1, %v117
    %v119 = vrot.slane %v111, %v118
    %vm120 = vcmp.ne.s32.totalorder %v115, 0
    %vm121 = vcmp.ne.s32.totalorder %v119, 0
    %vm122 = vmand %vm105, %vm120
    %vm123 = vmand %vm106, %vm121
    %v124 = vsel %vm110, 1, 0
    %v125 = vlaneseq
    %v126 = vshrl.u32 %v125, 7
    %v127 = vsub.s32 0, %v126
    %v128 = vrot.slane %v124, %v127
    %v129 = vlaneseq
    %v130 = vshrl.u32 %v129, 7
    %v131 = vsub.s32 1, %v130
    %v132 = vrot.slane %v124, %v131
    %vm133 = vcmp.ne.s32.totalorder %v128, 0
    %vm134 = vcmp.ne.s32.totalorder %v132, 0
    %vm135 = vmand %vm105, %vm133
    %vm136 = vmand %vm106, %vm134
    %vm137 = vmand %vm107, %vm120
    %vm138 = vmand %vm108, %vm121
    %vm139 = vmand %vm107, %vm133
    %vm140 = vmand %vm108, %vm134
    %v141 = vld [vmem:[#allocation4] sm:$0xff]
    %v143 = vcombine.high %v141, %v141
    %vm145 = vcmask 1043456
    %v146 = vsel %vm145, %v141, -inf
    %v147 = vrot.slane %v146, 4
    %v148 = vmax.f32 %v146, %v147
    %v149 = vrot.slane %v148, 2
    %v150 = vmax.f32 %v148, %v149
    %v151 = vrot.slane %v150, 1
    %v152 = vmax.f32 %v150, %v151
    %v153 = vsel %vm145, %v143, -inf
    %v154 = vrot.slane %v153, 4
    %v155 = vmax.f32 %v153, %v154
    %v156 = vrot.slane %v155, 2
    %v157 = vmax.f32 %v155, %v156
    %v158 = vrot.slane %v157, 1
    %v159 = vmax.f32 %v157, %v158
    %v160 = vsel %vm145, %v141, 0.0
    %v161 = vrot.slane %v160, 4
    %v162 = vadd.f32 %v160, %v161
    %v163 = vrot.slane %v162, 2
    %v164 = vadd.f32 %v162, %v163
    %v165 = vrot.slane %v164, 1
    %v166 = vadd.f32 %v164, %v165
    %v167 = vsel %vm145, %v143, 0.0
    %v168 = vrot.slane %v167, 4
    %v169 = vadd.f32 %v167, %v168
    %v170 = vrot.slane %v169, 2
    %v171 = vadd.f32 %v169, %v170
    %v172 = vrot.slane %v171, 1
    %v173 = vadd.f32 %v171, %v172
    %v174 = vrcp.pop 4.0
    %v175 = vmul.f32 %v166, %v174
    %v176 = vmul.f32 %v173, %v174
    %s177 = sld [smem:[#allocation2]]
    %v178 = vstv %s177
    %179 = vrot.lane.b32.xlu0 %v152, 17
    %v180 = vpop.permute.xlu0 %179
    %181 = vrot.lane.b32.xlu0 %v159, 17
    %v182 = vpop.permute.xlu0 %181
    %vm183 = vcmp.lt.s32.totalorder %v67, 17
    %v184 = vsel %vm183, %v180, %v182
    %v185 = vsel %vm183, %v182, %v180
    %186 = vrot.lane.b32.xlu0 %v175, 17
    %v187 = vpop.permute.xlu0 %186
    %188 = vrot.lane.b32.xlu0 %v176, 17
    %v189 = vpop.permute.xlu0 %188
    %v190 = vsel %vm183, %v187, %v189
    %v191 = vsel %vm183, %v189, %v187
    %s192 = sld [smem:[#allocation8]]
    %v193 = vstv %s192
    %v194 = vmul.f32 %v193, %v185
    %v195 = vmul.f32 %v193, %v184
    %s196 = sld [smem:[#allocation8 + $0x9]]
    %v197 = vstv %s196
    %v198 = vmul.f32 %v197, %v191
    %v199 = vmul.f32 %v197, %v190
    %v200 = vadd.f32 %v194, %v198
    %v201 = vadd.f32 %v195, %v199
    %v202 = vsel %vm86, %v200, 0.0
    %v203 = vsel %vm87, %v201, 0.0
    %v204 = vadd.f32 %v178, %v202
    %v205 = vadd.f32 %v178, %v203
    %206 = vrot.lane.b32.xlu0 %v152, 16
    %v207 = vpop.permute.xlu0 %206
    %208 = vrot.lane.b32.xlu0 %v159, 16
    %v209 = vpop.permute.xlu0 %208
    %vm210 = vcmp.lt.s32.totalorder %v67, 16
    %v211 = vsel %vm210, %v207, %v209
    %v212 = vsel %vm210, %v209, %v207
    %213 = vrot.lane.b32.xlu0 %v175, 16
    %v214 = vpop.permute.xlu0 %213
    %215 = vrot.lane.b32.xlu0 %v176, 16
    %v216 = vpop.permute.xlu0 %215
    %v217 = vsel %vm210, %v214, %v216
    %v218 = vsel %vm210, %v216, %v214
    %s219 = sld [smem:[#allocation8 + $0x1]]
    %v220 = vstv %s219
    %v221 = vmul.f32 %v220, %v212
    %v222 = vmul.f32 %v220, %v211
    %s223 = sld [smem:[#allocation8 + $0xa]]
    %v224 = vstv %s223
    %v225 = vmul.f32 %v224, %v218
    %v226 = vmul.f32 %v224, %v217
    %v227 = vadd.f32 %v221, %v225
    %v228 = vadd.f32 %v222, %v226
    %v229 = vsel %vm69, %v227, 0.0
    %v230 = vsel %vm70, %v228, 0.0
    %v231 = vadd.f32 %v204, %v229
    %v232 = vadd.f32 %v205, %v230
    %233 = vrot.lane.b32.xlu0 %v152, 15
    %v234 = vpop.permute.xlu0 %233
    %235 = vrot.lane.b32.xlu0 %v159, 15
    %v236 = vpop.permute.xlu0 %235
    %vm237 = vcmp.lt.s32.totalorder %v67, 15
    %v238 = vsel %vm237, %v234, %v236
    %v239 = vsel %vm237, %v236, %v234
    %240 = vrot.lane.b32.xlu0 %v175, 15
    %v241 = vpop.permute.xlu0 %240
    %242 = vrot.lane.b32.xlu0 %v176, 15
    %v243 = vpop.permute.xlu0 %242
    %v244 = vsel %vm237, %v241, %v243
    %v245 = vsel %vm237, %v243, %v241
    %s246 = sld [smem:[#allocation8 + $0x2]]
    %v247 = vstv %s246
    %v248 = vmul.f32 %v247, %v239
    %v249 = vmul.f32 %v247, %v238
    %s250 = sld [smem:[#allocation8 + $0xb]]
    %v251 = vstv %s250
    %v252 = vmul.f32 %v251, %v245
    %v253 = vmul.f32 %v251, %v244
    %v254 = vadd.f32 %v248, %v252
    %v255 = vadd.f32 %v249, %v253
    %v256 = vsel %vm99, %v254, 0.0
    %v257 = vsel %vm100, %v255, 0.0
    %v258 = vadd.f32 %v231, %v256
    %v259 = vadd.f32 %v232, %v257
    %260 = vrot.lane.b32.xlu0 %v152, 1
    %v261 = vpop.permute.xlu0 %260
    %262 = vrot.lane.b32.xlu0 %v159, 1
    %v263 = vpop.permute.xlu0 %262
    %vm264 = vcmp.lt.s32.totalorder %v67, 1
    %v265 = vsel %vm264, %v261, %v263
    %v266 = vsel %vm264, %v263, %v261
    %267 = vrot.lane.b32.xlu0 %v175, 1
    %v268 = vpop.permute.xlu0 %267
    %269 = vrot.lane.b32.xlu0 %v176, 1
    %v270 = vpop.permute.xlu0 %269
    %v271 = vsel %vm264, %v268, %v270
    %v272 = vsel %vm264, %v270, %v268
    %s273 = sld [smem:[#allocation8 + $0x3]]
    %v274 = vstv %s273
    %v275 = vmul.f32 %v274, %v266
    %v276 = vmul.f32 %v274, %v265
    %s277 = sld [smem:[#allocation8 + $0xc]]
    %v278 = vstv %s277
    %v279 = vmul.f32 %v278, %v272
    %v280 = vmul.f32 %v278, %v271
    %v281 = vadd.f32 %v275, %v279
    %v282 = vadd.f32 %v276, %v280
    %v285 = vcombine.low %v281, %v282
    %v287 = vunpack.c.l.s4 1966171168
    %v288 = vunpack.c.0.s8 %v287
    %v289 = vlaneseq
    %v290 = vshrl.u32 %v289, 7
    %v291 = vsub.s32 %v288, %v290
    %v292 = vrot.slane %v285, %v291
    %v294 = vunpack.c.l.s4 1966171168
    %v295 = vunpack.c.0.s8 %v294
    %v296 = vlaneseq
    %v297 = vshrl.u32 %v296, 7
    %v298 = vsub.s32 %v295, %v297
    %v299 = vrot.slane %v292, %v298
    %v301 = vsel %vm73, %v299, 0.0
    %v303 = vlaneseq
    %v304 = vshrl.u32 %v303, 7
    %v305 = vsub.s32 0, %v304
    %v306 = vrot.slane %v301, %v305
    %v307 = vlaneseq
    %v308 = vshrl.u32 %v307, 7
    %v309 = vsub.s32 1, %v308
    %v310 = vrot.slane %v301, %v309
    %v313 = vadd.f32 %v258, %v306
    %v314 = vadd.f32 %v259, %v310
    %s315 = sld [smem:[#allocation8 + $0x4]]
    %v316 = vstv %s315
    %v317 = vmul.f32 %v316, %v152
    %v318 = vmul.f32 %v316, %v159
    %s319 = sld [smem:[#allocation8 + $0xd]]
    %v320 = vstv %s319
    %v321 = vmul.f32 %v320, %v175
    %v322 = vmul.f32 %v320, %v176
    %v323 = vadd.f32 %v317, %v321
    %v324 = vadd.f32 %v318, %v322
    %v325 = vadd.f32 %v313, %v323
    %v326 = vadd.f32 %v314, %v324
    %327 = vrot.lane.b32.xlu0 %v152, 127
    %v328 = vpop.permute.xlu0 %327
    %329 = vrot.lane.b32.xlu0 %v159, 127
    %v330 = vpop.permute.xlu0 %329
    %vm331 = vcmp.lt.s32.totalorder %v67, 127
    %v332 = vsel %vm331, %v328, %v330
    %v333 = vsel %vm331, %v330, %v328
    %334 = vrot.lane.b32.xlu0 %v175, 127
    %v335 = vpop.permute.xlu0 %334
    %336 = vrot.lane.b32.xlu0 %v176, 127
    %v337 = vpop.permute.xlu0 %336
    %v338 = vsel %vm331, %v335, %v337
    %v339 = vsel %vm331, %v337, %v335
    %s340 = sld [smem:[#allocation8 + $0x5]]
    %v341 = vstv %s340
    %v342 = vmul.f32 %v341, %v332
    %v343 = vmul.f32 %v341, %v333
    %s344 = sld [smem:[#allocation8 + $0xe]]
    %v345 = vstv %s344
    %v346 = vmul.f32 %v345, %v338
    %v347 = vmul.f32 %v345, %v339
    %v348 = vadd.f32 %v342, %v346
    %v349 = vadd.f32 %v343, %v347
    %v352 = vcombine.low %v348, %v349
    %v354 = vunpack.c.l.s4 1966171168
    %v355 = vunpack.c.0.s8 %v354
    %v356 = vlaneseq
    %v357 = vshrl.u32 %v356, 7
    %v358 = vsub.s32 %v355, %v357
    %v359 = vrot.slane %v352, %v358
    %v361 = vunpack.c.l.s4 1966171168
    %v362 = vunpack.c.0.s8 %v361
    %v363 = vlaneseq
    %v364 = vshrl.u32 %v363, 7
    %v365 = vsub.s32 %v362, %v364
    %v366 = vrot.slane %v359, %v365
    %v368 = vsel %vm74, %v366, 0.0
    %v370 = vlaneseq
    %v371 = vshrl.u32 %v370, 7
    %v372 = vsub.s32 0, %v371
    %v373 = vrot.slane %v368, %v372
    %v374 = vlaneseq
    %v375 = vshrl.u32 %v374, 7
    %v376 = vsub.s32 1, %v375
    %v377 = vrot.slane %v368, %v376
    %v380 = vadd.f32 %v325, %v373
    %v381 = vadd.f32 %v326, %v377
    %382 = vrot.lane.b32.xlu0 %v152, 113
    %v383 = vpop.permute.xlu0 %382
    %384 = vrot.lane.b32.xlu0 %v159, 113
    %v385 = vpop.permute.xlu0 %384
    %vm386 = vcmp.lt.s32.totalorder %v67, 113
    %v387 = vsel %vm386, %v383, %v385
    %v388 = vsel %vm386, %v385, %v383
    %389 = vrot.lane.b32.xlu0 %v175, 113
    %v390 = vpop.permute.xlu0 %389
    %391 = vrot.lane.b32.xlu0 %v176, 113
    %v392 = vpop.permute.xlu0 %391
    %v393 = vsel %vm386, %v390, %v392
    %v394 = vsel %vm386, %v392, %v390
    %s395 = sld [smem:[#allocation8 + $0x6]]
    %v396 = vstv %s395
    %v397 = vmul.f32 %v396, %v387
    %v398 = vmul.f32 %v396, %v388
    %s399 = sld [smem:[#allocation8 + $0xf]]
    %v400 = vstv %s399
    %v401 = vmul.f32 %v400, %v393
    %v402 = vmul.f32 %v400, %v394
    %v403 = vadd.f32 %v397, %v401
    %v404 = vadd.f32 %v398, %v402
    %v405 = vsel %vm101, %v403, 0.0
    %v406 = vsel %vm102, %v404, 0.0
    %v407 = vadd.f32 %v380, %v405
    %v408 = vadd.f32 %v381, %v406
    %409 = vrot.lane.b32.xlu0 %v152, 112
    %v410 = vpop.permute.xlu0 %409
    %411 = vrot.lane.b32.xlu0 %v159, 112
    %v412 = vpop.permute.xlu0 %411
    %vm413 = vcmp.lt.s32.totalorder %v67, 112
    %v414 = vsel %vm413, %v410, %v412
    %v415 = vsel %vm413, %v412, %v410
    %416 = vrot.lane.b32.xlu0 %v175, 112
    %v417 = vpop.permute.xlu0 %416
    %418 = vrot.lane.b32.xlu0 %v176, 112
    %v419 = vpop.permute.xlu0 %418
    %v420 = vsel %vm413, %v417, %v419
    %v421 = vsel %vm413, %v419, %v417
    %s422 = sld [smem:[#allocation8 + $0x7]]
    %v423 = vstv %s422
    %v424 = vmul.f32 %v423, %v414
    %v425 = vmul.f32 %v423, %v415
    %s426 = sld [smem:[#allocation8 + $0x10]]
    %v427 = vstv %s426
    %v428 = vmul.f32 %v427, %v420
    %v429 = vmul.f32 %v427, %v421
    %v430 = vadd.f32 %v424, %v428
    %v431 = vadd.f32 %v425, %v429
    %v432 = vsel %vm71, %v430, 0.0
    %v433 = vsel %vm72, %v431, 0.0
    %v434 = vadd.f32 %v407, %v432
    %v435 = vadd.f32 %v408, %v433
    %436 = vrot.lane.b32.xlu0 %v152, 111
    %v437 = vpop.permute.xlu0 %436
    %438 = vrot.lane.b32.xlu0 %v159, 111
    %v439 = vpop.permute.xlu0 %438
    %vm440 = vcmp.lt.s32.totalorder %v67, 111
    %v441 = vsel %vm440, %v437, %v439
    %v442 = vsel %vm440, %v439, %v437
    %443 = vrot.lane.b32.xlu0 %v175, 111
    %v444 = vpop.permute.xlu0 %443
    %445 = vrot.lane.b32.xlu0 %v176, 111
    %v446 = vpop.permute.xlu0 %445
    %v447 = vsel %vm440, %v444, %v446
    %v448 = vsel %vm440, %v446, %v444
    %s449 = sld [smem:[#allocation8 + $0x8]]
    %v450 = vstv %s449
    %v451 = vmul.f32 %v450, %v441
    %v452 = vmul.f32 %v450, %v442
    %s453 = sld [smem:[#allocation8 + $0x11]]
    %v454 = vstv %s453
    %v455 = vmul.f32 %v454, %v447
    %v456 = vmul.f32 %v454, %v448
    %v457 = vadd.f32 %v451, %v455
    %v458 = vadd.f32 %v452, %v456
    %v459 = vsel %vm103, %v457, 0.0
    %v460 = vsel %vm104, %v458, 0.0
    %v461 = vadd.f32 %v434, %v459
    %v462 = vadd.f32 %v435, %v460
    %v463 = vlaneseq
    %v464 = vshrl.u32 %v463, 7
    %v465 = vsub.s32 0, %v464
    %v466 = vrot.slane %v461, %v465
    %v467 = vlaneseq
    %v468 = vshrl.u32 %v467, 7
    %v469 = vsub.s32 0, %v468
    %v470 = vrot.slane %v462, %v469
    %v471 = vmul.f32 %v466, %v141
    %v472 = vmul.f32 %v470, %v143
    %v475 = vcombine.low %v471, %v472
    %477 = vst [vmem:[#allocation11] sm:$0xff] %v475
    %s478 = sld [smem:[#allocation3]]
    %v479 = vstv %s478
    %480 = vrot.lane.b32.xlu0 %v152, 34
    %v481 = vpop.permute.xlu0 %480
    %482 = vrot.lane.b32.xlu0 %v159, 34
    %v483 = vpop.permute.xlu0 %482
    %vm484 = vcmp.lt.s32.totalorder %v67, 34
    %v485 = vsel %vm484, %v481, %v483
    %v486 = vsel %vm484, %v483, %v481
    %487 = vrot.lane.b32.xlu0 %v175, 34
    %v488 = vpop.permute.xlu0 %487
    %489 = vrot.lane.b32.xlu0 %v176, 34
    %v490 = vpop.permute.xlu0 %489
    %v491 = vsel %vm484, %v488, %v490
    %v492 = vsel %vm484, %v490, %v488
    %s493 = sld [smem:[#allocation9]]
    %v494 = vstv %s493
    %v495 = vmul.f32 %v494, %v486
    %v496 = vmul.f32 %v494, %v485
    %s497 = sld [smem:[#allocation9 + $0x9]]
    %v498 = vstv %s497
    %v499 = vmul.f32 %v498, %v492
    %v500 = vmul.f32 %v498, %v491
    %v501 = vadd.f32 %v495, %v499
    %v502 = vadd.f32 %v496, %v500
    %v503 = vsel %vm122, %v501, 0.0
    %v504 = vsel %vm123, %v502, 0.0
    %v505 = vadd.f32 %v479, %v503
    %v506 = vadd.f32 %v479, %v504
    %507 = vrot.lane.b32.xlu0 %v152, 32
    %v508 = vpop.permute.xlu0 %507
    %509 = vrot.lane.b32.xlu0 %v159, 32
    %v510 = vpop.permute.xlu0 %509
    %vm511 = vcmp.lt.s32.totalorder %v67, 32
    %v512 = vsel %vm511, %v508, %v510
    %v513 = vsel %vm511, %v510, %v508
    %514 = vrot.lane.b32.xlu0 %v175, 32
    %v515 = vpop.permute.xlu0 %514
    %516 = vrot.lane.b32.xlu0 %v176, 32
    %v517 = vpop.permute.xlu0 %516
    %v518 = vsel %vm511, %v515, %v517
    %v519 = vsel %vm511, %v517, %v515
    %s520 = sld [smem:[#allocation9 + $0x1]]
    %v521 = vstv %s520
    %v522 = vmul.f32 %v521, %v513
    %v523 = vmul.f32 %v521, %v512
    %s524 = sld [smem:[#allocation9 + $0xa]]
    %v525 = vstv %s524
    %v526 = vmul.f32 %v525, %v519
    %v527 = vmul.f32 %v525, %v518
    %v528 = vadd.f32 %v522, %v526
    %v529 = vadd.f32 %v523, %v527
    %v530 = vsel %vm105, %v528, 0.0
    %v531 = vsel %vm106, %v529, 0.0
    %v532 = vadd.f32 %v505, %v530
    %v533 = vadd.f32 %v506, %v531
    %534 = vrot.lane.b32.xlu0 %v152, 30
    %v535 = vpop.permute.xlu0 %534
    %536 = vrot.lane.b32.xlu0 %v159, 30
    %v537 = vpop.permute.xlu0 %536
    %vm538 = vcmp.lt.s32.totalorder %v67, 30
    %v539 = vsel %vm538, %v535, %v537
    %v540 = vsel %vm538, %v537, %v535
    %541 = vrot.lane.b32.xlu0 %v175, 30
    %v542 = vpop.permute.xlu0 %541
    %543 = vrot.lane.b32.xlu0 %v176, 30
    %v544 = vpop.permute.xlu0 %543
    %v545 = vsel %vm538, %v542, %v544
    %v546 = vsel %vm538, %v544, %v542
    %s547 = sld [smem:[#allocation9 + $0x2]]
    %v548 = vstv %s547
    %v549 = vmul.f32 %v548, %v540
    %v550 = vmul.f32 %v548, %v539
    %s551 = sld [smem:[#allocation9 + $0xb]]
    %v552 = vstv %s551
    %v553 = vmul.f32 %v552, %v546
    %v554 = vmul.f32 %v552, %v545
    %v555 = vadd.f32 %v549, %v553
    %v556 = vadd.f32 %v550, %v554
    %v557 = vsel %vm135, %v555, 0.0
    %v558 = vsel %vm136, %v556, 0.0
    %v559 = vadd.f32 %v532, %v557
    %v560 = vadd.f32 %v533, %v558
    %561 = vrot.lane.b32.xlu0 %v152, 2
    %v562 = vpop.permute.xlu0 %561
    %563 = vrot.lane.b32.xlu0 %v159, 2
    %v564 = vpop.permute.xlu0 %563
    %vm565 = vcmp.lt.s32.totalorder %v67, 2
    %v566 = vsel %vm565, %v562, %v564
    %v567 = vsel %vm565, %v564, %v562
    %568 = vrot.lane.b32.xlu0 %v175, 2
    %v569 = vpop.permute.xlu0 %568
    %570 = vrot.lane.b32.xlu0 %v176, 2
    %v571 = vpop.permute.xlu0 %570
    %v572 = vsel %vm565, %v569, %v571
    %v573 = vsel %vm565, %v571, %v569
    %s574 = sld [smem:[#allocation9 + $0x3]]
    %v575 = vstv %s574
    %v576 = vmul.f32 %v575, %v567
    %v577 = vmul.f32 %v575, %v566
    %s578 = sld [smem:[#allocation9 + $0xc]]
    %v579 = vstv %s578
    %v580 = vmul.f32 %v579, %v573
    %v581 = vmul.f32 %v579, %v572
    %v582 = vadd.f32 %v576, %v580
    %v583 = vadd.f32 %v577, %v581
    %v586 = vcombine.low %v582, %v583
    %v588 = vunpack.c.l.s4 1966171168
    %v589 = vunpack.c.0.s8 %v588
    %v590 = vlaneseq
    %v591 = vshrl.u32 %v590, 7
    %v592 = vsub.s32 %v589, %v591
    %v593 = vrot.slane %v586, %v592
    %v595 = vunpack.c.l.s4 1966171168
    %v596 = vunpack.c.0.s8 %v595
    %v597 = vlaneseq
    %v598 = vshrl.u32 %v597, 7
    %v599 = vsub.s32 %v596, %v598
    %v600 = vrot.slane %v593, %v599
    %v602 = vsel %vm109, %v600, 0.0
    %v604 = vlaneseq
    %v605 = vshrl.u32 %v604, 7
    %v606 = vsub.s32 0, %v605
    %v607 = vrot.slane %v602, %v606
    %v608 = vlaneseq
    %v609 = vshrl.u32 %v608, 7
    %v610 = vsub.s32 1, %v609
    %v611 = vrot.slane %v602, %v610
    %v614 = vadd.f32 %v559, %v607
    %v615 = vadd.f32 %v560, %v611
    %s616 = sld [smem:[#allocation9 + $0x4]]
    %v617 = vstv %s616
    %v618 = vmul.f32 %v617, %v152
    %v619 = vmul.f32 %v617, %v159
    %s620 = sld [smem:[#allocation9 + $0xd]]
    %v621 = vstv %s620
    %v622 = vmul.f32 %v621, %v175
    %v623 = vmul.f32 %v621, %v176
    %v624 = vadd.f32 %v618, %v622
    %v625 = vadd.f32 %v619, %v623
    %v626 = vadd.f32 %v614, %v624
    %v627 = vadd.f32 %v615, %v625
    %628 = vrot.lane.b32.xlu0 %v152, 126
    %v629 = vpop.permute.xlu0 %628
    %630 = vrot.lane.b32.xlu0 %v159, 126
    %v631 = vpop.permute.xlu0 %630
    %vm632 = vcmp.lt.s32.totalorder %v67, 126
    %v633 = vsel %vm632, %v629, %v631
    %v634 = vsel %vm632, %v631, %v629
    %635 = vrot.lane.b32.xlu0 %v175, 126
    %v636 = vpop.permute.xlu0 %635
    %637 = vrot.lane.b32.xlu0 %v176, 126
    %v638 = vpop.permute.xlu0 %637
    %v639 = vsel %vm632, %v636, %v638
    %v640 = vsel %vm632, %v638, %v636
    %s641 = sld [smem:[#allocation9 + $0x5]]
    %v642 = vstv %s641
    %v643 = vmul.f32 %v642, %v633
    %v644 = vmul.f32 %v642, %v634
    %s645 = sld [smem:[#allocation9 + $0xe]]
    %v646 = vstv %s645
    %v647 = vmul.f32 %v646, %v639
    %v648 = vmul.f32 %v646, %v640
    %v649 = vadd.f32 %v643, %v647
    %v650 = vadd.f32 %v644, %v648
    %v653 = vcombine.low %v649, %v650
    %v655 = vunpack.c.l.s4 1966171168
    %v656 = vunpack.c.0.s8 %v655
    %v657 = vlaneseq
    %v658 = vshrl.u32 %v657, 7
    %v659 = vsub.s32 %v656, %v658
    %v660 = vrot.slane %v653, %v659
    %v662 = vunpack.c.l.s4 1966171168
    %v663 = vunpack.c.0.s8 %v662
    %v664 = vlaneseq
    %v665 = vshrl.u32 %v664, 7
    %v666 = vsub.s32 %v663, %v665
    %v667 = vrot.slane %v660, %v666
    %v669 = vsel %vm110, %v667, 0.0
    %v671 = vlaneseq
    %v672 = vshrl.u32 %v671, 7
    %v673 = vsub.s32 0, %v672
    %v674 = vrot.slane %v669, %v673
    %v675 = vlaneseq
    %v676 = vshrl.u32 %v675, 7
    %v677 = vsub.s32 1, %v676
    %v678 = vrot.slane %v669, %v677
    %v681 = vadd.f32 %v626, %v674
    %v682 = vadd.f32 %v627, %v678
    %683 = vrot.lane.b32.xlu0 %v152, 98
    %v684 = vpop.permute.xlu0 %683
    %685 = vrot.lane.b32.xlu0 %v159, 98
    %v686 = vpop.permute.xlu0 %685
    %vm687 = vcmp.lt.s32.totalorder %v67, 98
    %v688 = vsel %vm687, %v684, %v686
    %v689 = vsel %vm687, %v686, %v684
    %690 = vrot.lane.b32.xlu0 %v175, 98
    %v691 = vpop.permute.xlu0 %690
    %692 = vrot.lane.b32.xlu0 %v176, 98
    %v693 = vpop.permute.xlu0 %692
    %v694 = vsel %vm687, %v691, %v693
    %v695 = vsel %vm687, %v693, %v691
    %s696 = sld [smem:[#allocation9 + $0x6]]
    %v697 = vstv %s696
    %v698 = vmul.f32 %v697, %v688
    %v699 = vmul.f32 %v697, %v689
    %s700 = sld [smem:[#allocation9 + $0xf]]
    %v701 = vstv %s700
    %v702 = vmul.f32 %v701, %v694
    %v703 = vmul.f32 %v701, %v695
    %v704 = vadd.f32 %v698, %v702
    %v705 = vadd.f32 %v699, %v703
    %v706 = vsel %vm137, %v704, 0.0
    %v707 = vsel %vm138, %v705, 0.0
    %v708 = vadd.f32 %v681, %v706
    %v709 = vadd.f32 %v682, %v707
    %710 = vrot.lane.b32.xlu0 %v152, 96
    %v711 = vpop.permute.xlu0 %710
    %712 = vrot.lane.b32.xlu0 %v159, 96
    %v713 = vpop.permute.xlu0 %712
    %vm714 = vcmp.lt.s32.totalorder %v67, 96
    %v715 = vsel %vm714, %v711, %v713
    %v716 = vsel %vm714, %v713, %v711
    %717 = vrot.lane.b32.xlu0 %v175, 96
    %v718 = vpop.permute.xlu0 %717
    %719 = vrot.lane.b32.xlu0 %v176, 96
    %v720 = vpop.permute.xlu0 %719
    %v721 = vsel %vm714, %v718, %v720
    %v722 = vsel %vm714, %v720, %v718
    %s723 = sld [smem:[#allocation9 + $0x7]]
    %v724 = vstv %s723
    %v725 = vmul.f32 %v724, %v715
    %v726 = vmul.f32 %v724, %v716
    %s727 = sld [smem:[#allocation9 + $0x10]]
    %v728 = vstv %s727
    %v729 = vmul.f32 %v728, %v721
    %v730 = vmul.f32 %v728, %v722
    %v731 = vadd.f32 %v725, %v729
    %v732 = vadd.f32 %v726, %v730
    %v733 = vsel %vm107, %v731, 0.0
    %v734 = vsel %vm108, %v732, 0.0
    %v735 = vadd.f32 %v708, %v733
    %v736 = vadd.f32 %v709, %v734
    %737 = vrot.lane.b32.xlu0 %v152, 94
    %v738 = vpop.permute.xlu0 %737
    %739 = vrot.lane.b32.xlu0 %v159, 94
    %v740 = vpop.permute.xlu0 %739
    %vm741 = vcmp.lt.s32.totalorder %v67, 94
    %v742 = vsel %vm741, %v738, %v740
    %v743 = vsel %vm741, %v740, %v738
    %744 = vrot.lane.b32.xlu0 %v175, 94
    %v745 = vpop.permute.xlu0 %744
    %746 = vrot.lane.b32.xlu0 %v176, 94
    %v747 = vpop.permute.xlu0 %746
    %v748 = vsel %vm741, %v745, %v747
    %v749 = vsel %vm741, %v747, %v745
    %s750 = sld [smem:[#allocation9 + $0x8]]
    %v751 = vstv %s750
    %v752 = vmul.f32 %v751, %v742
    %v753 = vmul.f32 %v751, %v743
    %s754 = sld [smem:[#allocation9 + $0x11]]
    %v755 = vstv %s754
    %v756 = vmul.f32 %v755, %v748
    %v757 = vmul.f32 %v755, %v749
    %v758 = vadd.f32 %v752, %v756
    %v759 = vadd.f32 %v753, %v757
    %v760 = vsel %vm139, %v758, 0.0
    %v761 = vsel %vm140, %v759, 0.0
    %v762 = vadd.f32 %v735, %v760
    %v763 = vadd.f32 %v736, %v761
    %v764 = vlaneseq
    %v765 = vshrl.u32 %v764, 7
    %v766 = vsub.s32 0, %v765
    %v767 = vrot.slane %v762, %v766
    %v768 = vlaneseq
    %v769 = vshrl.u32 %v768, 7
    %v770 = vsub.s32 0, %v769
    %v771 = vrot.slane %v763, %v770
    %v772 = vmul.f32 %v767, %v141
    %v773 = vmul.f32 %v771, %v143
    %v776 = vcombine.low %v772, %v773
    %778 = vst [vmem:[#allocation11 + $0x8] sm:$0xff] %v776
    %s779 = scalar_lea.vmem [#allocation4], 8
    %v780 = vld [vmem:[%s779] sm:$0xff]
    %v782 = vcombine.high %v780, %v780
    %v784 = vsel %vm145, %v780, -inf
    %v785 = vrot.slane %v784, 4
    %v786 = vmax.f32 %v784, %v785
    %v787 = vrot.slane %v786, 2
    %v788 = vmax.f32 %v786, %v787
    %v789 = vrot.slane %v788, 1
    %v790 = vmax.f32 %v788, %v789
    %v791 = vsel %vm145, %v782, -inf
    %v792 = vrot.slane %v791, 4
    %v793 = vmax.f32 %v791, %v792
    %v794 = vrot.slane %v793, 2
    %v795 = vmax.f32 %v793, %v794
    %v796 = vrot.slane %v795, 1
    %v797 = vmax.f32 %v795, %v796
    %v798 = vsel %vm145, %v780, 0.0
    %v799 = vrot.slane %v798, 4
    %v800 = vadd.f32 %v798, %v799
    %v801 = vrot.slane %v800, 2
    %v802 = vadd.f32 %v800, %v801
    %v803 = vrot.slane %v802, 1
    %v804 = vadd.f32 %v802, %v803
    %v805 = vsel %vm145, %v782, 0.0
    %v806 = vrot.slane %v805, 4
    %v807 = vadd.f32 %v805, %v806
    %v808 = vrot.slane %v807, 2
    %v809 = vadd.f32 %v807, %v808
    %v810 = vrot.slane %v809, 1
    %v811 = vadd.f32 %v809, %v810
    %v812 = vmul.f32 %v804, %v174
    %v813 = vmul.f32 %v811, %v174
    %s814 = sld [smem:[#allocation2]]
    %v815 = vstv %s814
    %816 = vrot.lane.b32.xlu0 %v790, 17
    %v817 = vpop.permute.xlu0 %816
    %818 = vrot.lane.b32.xlu0 %v797, 17
    %v819 = vpop.permute.xlu0 %818
    %v820 = vsel %vm183, %v817, %v819
    %v821 = vsel %vm183, %v819, %v817
    %822 = vrot.lane.b32.xlu0 %v812, 17
    %v823 = vpop.permute.xlu0 %822
    %824 = vrot.lane.b32.xlu0 %v813, 17
    %v825 = vpop.permute.xlu0 %824
    %v826 = vsel %vm183, %v823, %v825
    %v827 = vsel %vm183, %v825, %v823
    %s828 = sld [smem:[#allocation8]]
    %v829 = vstv %s828
    %v830 = vmul.f32 %v829, %v821
    %v831 = vmul.f32 %v829, %v820
    %s832 = sld [smem:[#allocation8 + $0x9]]
    %v833 = vstv %s832
    %v834 = vmul.f32 %v833, %v827
    %v835 = vmul.f32 %v833, %v826
    %v836 = vadd.f32 %v830, %v834
    %v837 = vadd.f32 %v831, %v835
    %v838 = vsel %vm86, %v836, 0.0
    %v839 = vsel %vm87, %v837, 0.0
    %v840 = vadd.f32 %v815, %v838
    %v841 = vadd.f32 %v815, %v839
    %842 = vrot.lane.b32.xlu0 %v790, 16
    %v843 = vpop.permute.xlu0 %842
    %844 = vrot.lane.b32.xlu0 %v797, 16
    %v845 = vpop.permute.xlu0 %844
    %v846 = vsel %vm210, %v843, %v845
    %v847 = vsel %vm210, %v845, %v843
    %848 = vrot.lane.b32.xlu0 %v812, 16
    %v849 = vpop.permute.xlu0 %848
    %850 = vrot.lane.b32.xlu0 %v813, 16
    %v851 = vpop.permute.xlu0 %850
    %v852 = vsel %vm210, %v849, %v851
    %v853 = vsel %vm210, %v851, %v849
    %s854 = sld [smem:[#allocation8 + $0x1]]
    %v855 = vstv %s854
    %v856 = vmul.f32 %v855, %v847
    %v857 = vmul.f32 %v855, %v846
    %s858 = sld [smem:[#allocation8 + $0xa]]
    %v859 = vstv %s858
    %v860 = vmul.f32 %v859, %v853
    %v861 = vmul.f32 %v859, %v852
    %v862 = vadd.f32 %v856, %v860
    %v863 = vadd.f32 %v857, %v861
    %v864 = vsel %vm69, %v862, 0.0
    %v865 = vsel %vm70, %v863, 0.0
    %v866 = vadd.f32 %v840, %v864
    %v867 = vadd.f32 %v841, %v865
    %868 = vrot.lane.b32.xlu0 %v790, 15
    %v869 = vpop.permute.xlu0 %868
    %870 = vrot.lane.b32.xlu0 %v797, 15
    %v871 = vpop.permute.xlu0 %870
    %v872 = vsel %vm237, %v869, %v871
    %v873 = vsel %vm237, %v871, %v869
    %874 = vrot.lane.b32.xlu0 %v812, 15
    %v875 = vpop.permute.xlu0 %874
    %876 = vrot.lane.b32.xlu0 %v813, 15
    %v877 = vpop.permute.xlu0 %876
    %v878 = vsel %vm237, %v875, %v877
    %v879 = vsel %vm237, %v877, %v875
    %s880 = sld [smem:[#allocation8 + $0x2]]
    %v881 = vstv %s880
    %v882 = vmul.f32 %v881, %v873
    %v883 = vmul.f32 %v881, %v872
    %s884 = sld [smem:[#allocation8 + $0xb]]
    %v885 = vstv %s884
    %v886 = vmul.f32 %v885, %v879
    %v887 = vmul.f32 %v885, %v878
    %v888 = vadd.f32 %v882, %v886
    %v889 = vadd.f32 %v883, %v887
    %v890 = vsel %vm99, %v888, 0.0
    %v891 = vsel %vm100, %v889, 0.0
    %v892 = vadd.f32 %v866, %v890
    %v893 = vadd.f32 %v867, %v891
    %894 = vrot.lane.b32.xlu0 %v790, 1
    %v895 = vpop.permute.xlu0 %894
    %896 = vrot.lane.b32.xlu0 %v797, 1
    %v897 = vpop.permute.xlu0 %896
    %v898 = vsel %vm264, %v895, %v897
    %v899 = vsel %vm264, %v897, %v895
    %900 = vrot.lane.b32.xlu0 %v812, 1
    %v901 = vpop.permute.xlu0 %900
    %902 = vrot.lane.b32.xlu0 %v813, 1
    %v903 = vpop.permute.xlu0 %902
    %v904 = vsel %vm264, %v901, %v903
    %v905 = vsel %vm264, %v903, %v901
    %s906 = sld [smem:[#allocation8 + $0x3]]
    %v907 = vstv %s906
    %v908 = vmul.f32 %v907, %v899
    %v909 = vmul.f32 %v907, %v898
    %s910 = sld [smem:[#allocation8 + $0xc]]
    %v911 = vstv %s910
    %v912 = vmul.f32 %v911, %v905
    %v913 = vmul.f32 %v911, %v904
    %v914 = vadd.f32 %v908, %v912
    %v915 = vadd.f32 %v909, %v913
    %v918 = vcombine.low %v914, %v915
    %v920 = vunpack.c.l.s4 1966171168
    %v921 = vunpack.c.0.s8 %v920
    %v922 = vlaneseq
    %v923 = vshrl.u32 %v922, 7
    %v924 = vsub.s32 %v921, %v923
    %v925 = vrot.slane %v918, %v924
    %v927 = vunpack.c.l.s4 1966171168
    %v928 = vunpack.c.0.s8 %v927
    %v929 = vlaneseq
    %v930 = vshrl.u32 %v929, 7
    %v931 = vsub.s32 %v928, %v930
    %v932 = vrot.slane %v925, %v931
    %v934 = vsel %vm73, %v932, 0.0
    %v936 = vlaneseq
    %v937 = vshrl.u32 %v936, 7
    %v938 = vsub.s32 0, %v937
    %v939 = vrot.slane %v934, %v938
    %v940 = vlaneseq
    %v941 = vshrl.u32 %v940, 7
    %v942 = vsub.s32 1, %v941
    %v943 = vrot.slane %v934, %v942
    %v946 = vadd.f32 %v892, %v939
    %v947 = vadd.f32 %v893, %v943
    %s948 = sld [smem:[#allocation8 + $0x4]]
    %v949 = vstv %s948
    %v950 = vmul.f32 %v949, %v790
    %v951 = vmul.f32 %v949, %v797
    %s952 = sld [smem:[#allocation8 + $0xd]]
    %v953 = vstv %s952
    %v954 = vmul.f32 %v953, %v812
    %v955 = vmul.f32 %v953, %v813
    %v956 = vadd.f32 %v950, %v954
    %v957 = vadd.f32 %v951, %v955
    %v958 = vadd.f32 %v946, %v956
    %v959 = vadd.f32 %v947, %v957
    %960 = vrot.lane.b32.xlu0 %v790, 127
    %v961 = vpop.permute.xlu0 %960
    %962 = vrot.lane.b32.xlu0 %v797, 127
    %v963 = vpop.permute.xlu0 %962
    %v964 = vsel %vm331, %v961, %v963
    %v965 = vsel %vm331, %v963, %v961
    %966 = vrot.lane.b32.xlu0 %v812, 127
    %v967 = vpop.permute.xlu0 %966
    %968 = vrot.lane.b32.xlu0 %v813, 127
    %v969 = vpop.permute.xlu0 %968
    %v970 = vsel %vm331, %v967, %v969
    %v971 = vsel %vm331, %v969, %v967
    %s972 = sld [smem:[#allocation8 + $0x5]]
    %v973 = vstv %s972
    %v974 = vmul.f32 %v973, %v964
    %v975 = vmul.f32 %v973, %v965
    %s976 = sld [smem:[#allocation8 + $0xe]]
    %v977 = vstv %s976
    %v978 = vmul.f32 %v977, %v970
    %v979 = vmul.f32 %v977, %v971
    %v980 = vadd.f32 %v974, %v978
    %v981 = vadd.f32 %v975, %v979
    %v984 = vcombine.low %v980, %v981
    %v986 = vunpack.c.l.s4 1966171168
    %v987 = vunpack.c.0.s8 %v986
    %v988 = vlaneseq
    %v989 = vshrl.u32 %v988, 7
    %v990 = vsub.s32 %v987, %v989
    %v991 = vrot.slane %v984, %v990
    %v993 = vunpack.c.l.s4 1966171168
    %v994 = vunpack.c.0.s8 %v993
    %v995 = vlaneseq
    %v996 = vshrl.u32 %v995, 7
    %v997 = vsub.s32 %v994, %v996
    %v998 = vrot.slane %v991, %v997
    %v1000 = vsel %vm74, %v998, 0.0
    %v1002 = vlaneseq
    %v1003 = vshrl.u32 %v1002, 7
    %v1004 = vsub.s32 0, %v1003
    %v1005 = vrot.slane %v1000, %v1004
    %v1006 = vlaneseq
    %v1007 = vshrl.u32 %v1006, 7
    %v1008 = vsub.s32 1, %v1007
    %v1009 = vrot.slane %v1000, %v1008
    %v1012 = vadd.f32 %v958, %v1005
    %v1013 = vadd.f32 %v959, %v1009
    %1014 = vrot.lane.b32.xlu0 %v790, 113
    %v1015 = vpop.permute.xlu0 %1014
    %1016 = vrot.lane.b32.xlu0 %v797, 113
    %v1017 = vpop.permute.xlu0 %1016
    %v1018 = vsel %vm386, %v1015, %v1017
    %v1019 = vsel %vm386, %v1017, %v1015
    %1020 = vrot.lane.b32.xlu0 %v812, 113
    %v1021 = vpop.permute.xlu0 %1020
    %1022 = vrot.lane.b32.xlu0 %v813, 113
    %v1023 = vpop.permute.xlu0 %1022
    %v1024 = vsel %vm386, %v1021, %v1023
    %v1025 = vsel %vm386, %v1023, %v1021
    %s1026 = sld [smem:[#allocation8 + $0x6]]
    %v1027 = vstv %s1026
    %v1028 = vmul.f32 %v1027, %v1018
    %v1029 = vmul.f32 %v1027, %v1019
    %s1030 = sld [smem:[#allocation8 + $0xf]]
    %v1031 = vstv %s1030
    %v1032 = vmul.f32 %v1031, %v1024
    %v1033 = vmul.f32 %v1031, %v1025
    %v1034 = vadd.f32 %v1028, %v1032
    %v1035 = vadd.f32 %v1029, %v1033
    %v1036 = vsel %vm101, %v1034, 0.0
    %v1037 = vsel %vm102, %v1035, 0.0
    %v1038 = vadd.f32 %v1012, %v1036
    %v1039 = vadd.f32 %v1013, %v1037
    %1040 = vrot.lane.b32.xlu0 %v790, 112
    %v1041 = vpop.permute.xlu0 %1040
    %1042 = vrot.lane.b32.xlu0 %v797, 112
    %v1043 = vpop.permute.xlu0 %1042
    %v1044 = vsel %vm413, %v1041, %v1043
    %v1045 = vsel %vm413, %v1043, %v1041
    %1046 = vrot.lane.b32.xlu0 %v812, 112
    %v1047 = vpop.permute.xlu0 %1046
    %1048 = vrot.lane.b32.xlu0 %v813, 112
    %v1049 = vpop.permute.xlu0 %1048
    %v1050 = vsel %vm413, %v1047, %v1049
    %v1051 = vsel %vm413, %v1049, %v1047
    %s1052 = sld [smem:[#allocation8 + $0x7]]
    %v1053 = vstv %s1052
    %v1054 = vmul.f32 %v1053, %v1044
    %v1055 = vmul.f32 %v1053, %v1045
    %s1056 = sld [smem:[#allocation8 + $0x10]]
    %v1057 = vstv %s1056
    %v1058 = vmul.f32 %v1057, %v1050
    %v1059 = vmul.f32 %v1057, %v1051
    %v1060 = vadd.f32 %v1054, %v1058
    %v1061 = vadd.f32 %v1055, %v1059
    %v1062 = vsel %vm71, %v1060, 0.0
    %v1063 = vsel %vm72, %v1061, 0.0
    %v1064 = vadd.f32 %v1038, %v1062
    %v1065 = vadd.f32 %v1039, %v1063
    %1066 = vrot.lane.b32.xlu0 %v790, 111
    %v1067 = vpop.permute.xlu0 %1066
    %1068 = vrot.lane.b32.xlu0 %v797, 111
    %v1069 = vpop.permute.xlu0 %1068
    %v1070 = vsel %vm440, %v1067, %v1069
    %v1071 = vsel %vm440, %v1069, %v1067
    %1072 = vrot.lane.b32.xlu0 %v812, 111
    %v1073 = vpop.permute.xlu0 %1072
    %1074 = vrot.lane.b32.xlu0 %v813, 111
    %v1075 = vpop.permute.xlu0 %1074
    %v1076 = vsel %vm440, %v1073, %v1075
    %v1077 = vsel %vm440, %v1075, %v1073
    %s1078 = sld [smem:[#allocation8 + $0x8]]
    %v1079 = vstv %s1078
    %v1080 = vmul.f32 %v1079, %v1070
    %v1081 = vmul.f32 %v1079, %v1071
    %s1082 = sld [smem:[#allocation8 + $0x11]]
    %v1083 = vstv %s1082
    %v1084 = vmul.f32 %v1083, %v1076
    %v1085 = vmul.f32 %v1083, %v1077
    %v1086 = vadd.f32 %v1080, %v1084
    %v1087 = vadd.f32 %v1081, %v1085
    %v1088 = vsel %vm103, %v1086, 0.0
    %v1089 = vsel %vm104, %v1087, 0.0
    %v1090 = vadd.f32 %v1064, %v1088
    %v1091 = vadd.f32 %v1065, %v1089
    %v1092 = vlaneseq
    %v1093 = vshrl.u32 %v1092, 7
    %v1094 = vsub.s32 0, %v1093
    %v1095 = vrot.slane %v1090, %v1094
    %v1096 = vlaneseq
    %v1097 = vshrl.u32 %v1096, 7
    %v1098 = vsub.s32 0, %v1097
    %v1099 = vrot.slane %v1091, %v1098
    %v1100 = vmul.f32 %v1095, %v780
    %v1101 = vmul.f32 %v1099, %v782
    %v1104 = vcombine.low %v1100, %v1101
    %s1106 = scalar_lea.vmem [#allocation11], 16
    %1107 = vst [vmem:[%s1106] sm:$0xff] %v1104
    %s1108 = sld [smem:[#allocation3]]
    %v1109 = vstv %s1108
    %1110 = vrot.lane.b32.xlu0 %v790, 34
    %v1111 = vpop.permute.xlu0 %1110
    %1112 = vrot.lane.b32.xlu0 %v797, 34
    %v1113 = vpop.permute.xlu0 %1112
    %v1114 = vsel %vm484, %v1111, %v1113
    %v1115 = vsel %vm484, %v1113, %v1111
    %1116 = vrot.lane.b32.xlu0 %v812, 34
    %v1117 = vpop.permute.xlu0 %1116
    %1118 = vrot.lane.b32.xlu0 %v813, 34
    %v1119 = vpop.permute.xlu0 %1118
    %v1120 = vsel %vm484, %v1117, %v1119
    %v1121 = vsel %vm484, %v1119, %v1117
    %s1122 = sld [smem:[#allocation9]]
    %v1123 = vstv %s1122
    %v1124 = vmul.f32 %v1123, %v1115
    %v1125 = vmul.f32 %v1123, %v1114
    %s1126 = sld [smem:[#allocation9 + $0x9]]
    %v1127 = vstv %s1126
    %v1128 = vmul.f32 %v1127, %v1121
    %v1129 = vmul.f32 %v1127, %v1120
    %v1130 = vadd.f32 %v1124, %v1128
    %v1131 = vadd.f32 %v1125, %v1129
    %v1132 = vsel %vm122, %v1130, 0.0
    %v1133 = vsel %vm123, %v1131, 0.0
    %v1134 = vadd.f32 %v1109, %v1132
    %v1135 = vadd.f32 %v1109, %v1133
    %1136 = vrot.lane.b32.xlu0 %v790, 32
    %v1137 = vpop.permute.xlu0 %1136
    %1138 = vrot.lane.b32.xlu0 %v797, 32
    %v1139 = vpop.permute.xlu0 %1138
    %v1140 = vsel %vm511, %v1137, %v1139
    %v1141 = vsel %vm511, %v1139, %v1137
    %1142 = vrot.lane.b32.xlu0 %v812, 32
    %v1143 = vpop.permute.xlu0 %1142
    %1144 = vrot.lane.b32.xlu0 %v813, 32
    %v1145 = vpop.permute.xlu0 %1144
    %v1146 = vsel %vm511, %v1143, %v1145
    %v1147 = vsel %vm511, %v1145, %v1143
    %s1148 = sld [smem:[#allocation9 + $0x1]]
    %v1149 = vstv %s1148
    %v1150 = vmul.f32 %v1149, %v1141
    %v1151 = vmul.f32 %v1149, %v1140
    %s1152 = sld [smem:[#allocation9 + $0xa]]
    %v1153 = vstv %s1152
    %v1154 = vmul.f32 %v1153, %v1147
    %v1155 = vmul.f32 %v1153, %v1146
    %v1156 = vadd.f32 %v1150, %v1154
    %v1157 = vadd.f32 %v1151, %v1155
    %v1158 = vsel %vm105, %v1156, 0.0
    %v1159 = vsel %vm106, %v1157, 0.0
    %v1160 = vadd.f32 %v1134, %v1158
    %v1161 = vadd.f32 %v1135, %v1159
    %1162 = vrot.lane.b32.xlu0 %v790, 30
    %v1163 = vpop.permute.xlu0 %1162
    %1164 = vrot.lane.b32.xlu0 %v797, 30
    %v1165 = vpop.permute.xlu0 %1164
    %v1166 = vsel %vm538, %v1163, %v1165
    %v1167 = vsel %vm538, %v1165, %v1163
    %1168 = vrot.lane.b32.xlu0 %v812, 30
    %v1169 = vpop.permute.xlu0 %1168
    %1170 = vrot.lane.b32.xlu0 %v813, 30
    %v1171 = vpop.permute.xlu0 %1170
    %v1172 = vsel %vm538, %v1169, %v1171
    %v1173 = vsel %vm538, %v1171, %v1169
    %s1174 = sld [smem:[#allocation9 + $0x2]]
    %v1175 = vstv %s1174
    %v1176 = vmul.f32 %v1175, %v1167
    %v1177 = vmul.f32 %v1175, %v1166
    %s1178 = sld [smem:[#allocation9 + $0xb]]
    %v1179 = vstv %s1178
    %v1180 = vmul.f32 %v1179, %v1173
    %v1181 = vmul.f32 %v1179, %v1172
    %v1182 = vadd.f32 %v1176, %v1180
    %v1183 = vadd.f32 %v1177, %v1181
    %v1184 = vsel %vm135, %v1182, 0.0
    %v1185 = vsel %vm136, %v1183, 0.0
    %v1186 = vadd.f32 %v1160, %v1184
    %v1187 = vadd.f32 %v1161, %v1185
    %1188 = vrot.lane.b32.xlu0 %v790, 2
    %v1189 = vpop.permute.xlu0 %1188
    %1190 = vrot.lane.b32.xlu0 %v797, 2
    %v1191 = vpop.permute.xlu0 %1190
    %v1192 = vsel %vm565, %v1189, %v1191
    %v1193 = vsel %vm565, %v1191, %v1189
    %1194 = vrot.lane.b32.xlu0 %v812, 2
    %v1195 = vpop.permute.xlu0 %1194
    %1196 = vrot.lane.b32.xlu0 %v813, 2
    %v1197 = vpop.permute.xlu0 %1196
    %v1198 = vsel %vm565, %v1195, %v1197
    %v1199 = vsel %vm565, %v1197, %v1195
    %s1200 = sld [smem:[#allocation9 + $0x3]]
    %v1201 = vstv %s1200
    %v1202 = vmul.f32 %v1201, %v1193
    %v1203 = vmul.f32 %v1201, %v1192
    %s1204 = sld [smem:[#allocation9 + $0xc]]
    %v1205 = vstv %s1204
    %v1206 = vmul.f32 %v1205, %v1199
    %v1207 = vmul.f32 %v1205, %v1198
    %v1208 = vadd.f32 %v1202, %v1206
    %v1209 = vadd.f32 %v1203, %v1207
    %v1212 = vcombine.low %v1208, %v1209
    %v1214 = vunpack.c.l.s4 1966171168
    %v1215 = vunpack.c.0.s8 %v1214
    %v1216 = vlaneseq
    %v1217 = vshrl.u32 %v1216, 7
    %v1218 = vsub.s32 %v1215, %v1217
    %v1219 = vrot.slane %v1212, %v1218
    %v1221 = vunpack.c.l.s4 1966171168
    %v1222 = vunpack.c.0.s8 %v1221
    %v1223 = vlaneseq
    %v1224 = vshrl.u32 %v1223, 7
    %v1225 = vsub.s32 %v1222, %v1224
    %v1226 = vrot.slane %v1219, %v1225
    %v1228 = vsel %vm109, %v1226, 0.0
    %v1230 = vlaneseq
    %v1231 = vshrl.u32 %v1230, 7
    %v1232 = vsub.s32 0, %v1231
    %v1233 = vrot.slane %v1228, %v1232
    %v1234 = vlaneseq
    %v1235 = vshrl.u32 %v1234, 7
    %v1236 = vsub.s32 1, %v1235
    %v1237 = vrot.slane %v1228, %v1236
    %v1240 = vadd.f32 %v1186, %v1233
    %v1241 = vadd.f32 %v1187, %v1237
    %s1242 = sld [smem:[#allocation9 + $0x4]]
    %v1243 = vstv %s1242
    %v1244 = vmul.f32 %v1243, %v790
    %v1245 = vmul.f32 %v1243, %v797
    %s1246 = sld [smem:[#allocation9 + $0xd]]
    %v1247 = vstv %s1246
    %v1248 = vmul.f32 %v1247, %v812
    %v1249 = vmul.f32 %v1247, %v813
    %v1250 = vadd.f32 %v1244, %v1248
    %v1251 = vadd.f32 %v1245, %v1249
    %v1252 = vadd.f32 %v1240, %v1250
    %v1253 = vadd.f32 %v1241, %v1251
    %1254 = vrot.lane.b32.xlu0 %v790, 126
    %v1255 = vpop.permute.xlu0 %1254
    %1256 = vrot.lane.b32.xlu0 %v797, 126
    %v1257 = vpop.permute.xlu0 %1256
    %v1258 = vsel %vm632, %v1255, %v1257
    %v1259 = vsel %vm632, %v1257, %v1255
    %1260 = vrot.lane.b32.xlu0 %v812, 126
    %v1261 = vpop.permute.xlu0 %1260
    %1262 = vrot.lane.b32.xlu0 %v813, 126
    %v1263 = vpop.permute.xlu0 %1262
    %v1264 = vsel %vm632, %v1261, %v1263
    %v1265 = vsel %vm632, %v1263, %v1261
    %s1266 = sld [smem:[#allocation9 + $0x5]]
    %v1267 = vstv %s1266
    %v1268 = vmul.f32 %v1267, %v1258
    %v1269 = vmul.f32 %v1267, %v1259
    %s1270 = sld [smem:[#allocation9 + $0xe]]
    %v1271 = vstv %s1270
    %v1272 = vmul.f32 %v1271, %v1264
    %v1273 = vmul.f32 %v1271, %v1265
    %v1274 = vadd.f32 %v1268, %v1272
    %v1275 = vadd.f32 %v1269, %v1273
    %v1278 = vcombine.low %v1274, %v1275
    %v1280 = vunpack.c.l.s4 1966171168
    %v1281 = vunpack.c.0.s8 %v1280
    %v1282 = vlaneseq
    %v1283 = vshrl.u32 %v1282, 7
    %v1284 = vsub.s32 %v1281, %v1283
    %v1285 = vrot.slane %v1278, %v1284
    %v1287 = vunpack.c.l.s4 1966171168
    %v1288 = vunpack.c.0.s8 %v1287
    %v1289 = vlaneseq
    %v1290 = vshrl.u32 %v1289, 7
    %v1291 = vsub.s32 %v1288, %v1290
    %v1292 = vrot.slane %v1285, %v1291
    %v1294 = vsel %vm110, %v1292, 0.0
    %v1296 = vlaneseq
    %v1297 = vshrl.u32 %v1296, 7
    %v1298 = vsub.s32 0, %v1297
    %v1299 = vrot.slane %v1294, %v1298
    %v1300 = vlaneseq
    %v1301 = vshrl.u32 %v1300, 7
    %v1302 = vsub.s32 1, %v1301
    %v1303 = vrot.slane %v1294, %v1302
    %v1306 = vadd.f32 %v1252, %v1299
    %v1307 = vadd.f32 %v1253, %v1303
    %1308 = vrot.lane.b32.xlu0 %v790, 98
    %v1309 = vpop.permute.xlu0 %1308
    %1310 = vrot.lane.b32.xlu0 %v797, 98
    %v1311 = vpop.permute.xlu0 %1310
    %v1312 = vsel %vm687, %v1309, %v1311
    %v1313 = vsel %vm687, %v1311, %v1309
    %1314 = vrot.lane.b32.xlu0 %v812, 98
    %v1315 = vpop.permute.xlu0 %1314
    %1316 = vrot.lane.b32.xlu0 %v813, 98
    %v1317 = vpop.permute.xlu0 %1316
    %v1318 = vsel %vm687, %v1315, %v1317
    %v1319 = vsel %vm687, %v1317, %v1315
    %s1320 = sld [smem:[#allocation9 + $0x6]]
    %v1321 = vstv %s1320
    %v1322 = vmul.f32 %v1321, %v1312
    %v1323 = vmul.f32 %v1321, %v1313
    %s1324 = sld [smem:[#allocation9 + $0xf]]
    %v1325 = vstv %s1324
    %v1326 = vmul.f32 %v1325, %v1318
    %v1327 = vmul.f32 %v1325, %v1319
    %v1328 = vadd.f32 %v1322, %v1326
    %v1329 = vadd.f32 %v1323, %v1327
    %v1330 = vsel %vm137, %v1328, 0.0
    %v1331 = vsel %vm138, %v1329, 0.0
    %v1332 = vadd.f32 %v1306, %v1330
    %v1333 = vadd.f32 %v1307, %v1331
    %1334 = vrot.lane.b32.xlu0 %v790, 96
    %v1335 = vpop.permute.xlu0 %1334
    %1336 = vrot.lane.b32.xlu0 %v797, 96
    %v1337 = vpop.permute.xlu0 %1336
    %v1338 = vsel %vm714, %v1335, %v1337
    %v1339 = vsel %vm714, %v1337, %v1335
    %1340 = vrot.lane.b32.xlu0 %v812, 96
    %v1341 = vpop.permute.xlu0 %1340
    %1342 = vrot.lane.b32.xlu0 %v813, 96
    %v1343 = vpop.permute.xlu0 %1342
    %v1344 = vsel %vm714, %v1341, %v1343
    %v1345 = vsel %vm714, %v1343, %v1341
    %s1346 = sld [smem:[#allocation9 + $0x7]]
    %v1347 = vstv %s1346
    %v1348 = vmul.f32 %v1347, %v1338
    %v1349 = vmul.f32 %v1347, %v1339
    %s1350 = sld [smem:[#allocation9 + $0x10]]
    %v1351 = vstv %s1350
    %v1352 = vmul.f32 %v1351, %v1344
    %v1353 = vmul.f32 %v1351, %v1345
    %v1354 = vadd.f32 %v1348, %v1352
    %v1355 = vadd.f32 %v1349, %v1353
    %v1356 = vsel %vm107, %v1354, 0.0
    %v1357 = vsel %vm108, %v1355, 0.0
    %v1358 = vadd.f32 %v1332, %v1356
    %v1359 = vadd.f32 %v1333, %v1357
    %1360 = vrot.lane.b32.xlu0 %v790, 94
    %v1361 = vpop.permute.xlu0 %1360
    %1362 = vrot.lane.b32.xlu0 %v797, 94
    %v1363 = vpop.permute.xlu0 %1362
    %v1364 = vsel %vm741, %v1361, %v1363
    %v1365 = vsel %vm741, %v1363, %v1361
    %1366 = vrot.lane.b32.xlu0 %v812, 94
    %v1367 = vpop.permute.xlu0 %1366
    %1368 = vrot.lane.b32.xlu0 %v813, 94
    %v1369 = vpop.permute.xlu0 %1368
    %v1370 = vsel %vm741, %v1367, %v1369
    %v1371 = vsel %vm741, %v1369, %v1367
    %s1372 = sld [smem:[#allocation9 + $0x8]]
    %v1373 = vstv %s1372
    %v1374 = vmul.f32 %v1373, %v1364
    %v1375 = vmul.f32 %v1373, %v1365
    %s1376 = sld [smem:[#allocation9 + $0x11]]
    %v1377 = vstv %s1376
    %v1378 = vmul.f32 %v1377, %v1370
    %v1379 = vmul.f32 %v1377, %v1371
    %v1380 = vadd.f32 %v1374, %v1378
    %v1381 = vadd.f32 %v1375, %v1379
    %v1382 = vsel %vm139, %v1380, 0.0
    %v1383 = vsel %vm140, %v1381, 0.0
    %v1384 = vadd.f32 %v1358, %v1382
    %v1385 = vadd.f32 %v1359, %v1383
    %v1386 = vlaneseq
    %v1387 = vshrl.u32 %v1386, 7
    %v1388 = vsub.s32 0, %v1387
    %v1389 = vrot.slane %v1384, %v1388
    %v1390 = vlaneseq
    %v1391 = vshrl.u32 %v1390, 7
    %v1392 = vsub.s32 0, %v1391
    %v1393 = vrot.slane %v1385, %v1392
    %v1394 = vmul.f32 %v1389, %v780
    %v1395 = vmul.f32 %v1393, %v782
    %v1398 = vcombine.low %v1394, %v1395
    %1400 = vst [vmem:[%s1106 + $0x8] sm:$0xff] %v1398
    // Predicated region
    $region38: #{tpu_custom_call.1} parent=1 // pred_check
      _
    $region39: #{tpu_custom_call.1} parent=1 // pred_check_branch
      %1402 = sbr.rel (0) target = $region41
    $region40: #{tpu_custom_call.1} parent=1 // pred_region
      %s1404 = ssub.s32 512, 512
      %1405 = vsyncadd [#allocation6], %s1404
      %s1406 = sshll.u32 [#allocation11], 4
      %s1407 = int_to_ptr.vmem [resolvable:$true] %s1406
      %1412 = dma.vmem_to_hbm [thread:$0]  %s1407, 512, %s6, [#allocation6], 256, 256, 16
    $region41: #{tpu_custom_call.1} parent=1 // pred_fallthru
      _
    // Predicated region
    $region42: #{tpu_custom_call.1} parent=1 // pred_check
      _
    $region43: #{tpu_custom_call.1} parent=1 // pred_check_branch
      %1414 = sbr.rel (0) target = $region45
    $region44: #{tpu_custom_call.1} parent=1 // pred_region
      %1415 = dma.done [#allocation6], 512
    $region45: #{tpu_custom_call.1} parent=1 // pred_fallthru
      _
    %1416 = vsyncpa [#allocation5], 1
    %1417 = vsyncpa [#allocation6], 1
    %1418 = vsyncpa [#allocation7], 1
    %1419 = vsyncpa [#allocation10], 1

</llo_original>
